<compile_context>
chip_gen: v6e
topology: v6e:2x2x1
jax: 0.10.0
libtpu: 0.0.40
codegen_flags: <defaults>
</compile_context>

<pallas_src>
import functools
import math

import jax
import jax.numpy as jnp
from jax.experimental import pallas as pl
from jax.experimental.pallas import tpu as pltpu

LANE = 128
SUBLANE = 8
MAX_TIME_CHUNK = 32          # full-unroll budget per grid step


def _round_up(n, m):
    return ((n + m - 1) // m) * m


# ---------------------------------------------------------------------------
# Fused GRU chunk kernel (single layer, unidirectional, h0 = 0,
# PyTorch gate order r, z, n).  One grid step == one time chunk.
# ---------------------------------------------------------------------------
def _gru_chunk_kernel(x_ref, wih_ref, whh_ref, bih_ref, bhhn_ref,
                      out_ref, gi_ref, h_ref, *, chunk_len, b_pad):
    d_pad = whh_ref.shape[0]

    # h carry lives in VMEM scratch across grid steps; zero it on chunk 0.
    @pl.when(pl.program_id(0) == 0)
    def _():
        h_ref[...] = jnp.zeros_like(h_ref)

    # (1) Hoisted input projection for this chunk: one lane-dense MXU matmul
    #     for all chunk_len timesteps (bf16 operands, f32 accumulation), held
    #     in VMEM scratch (never round-trips HBM).  Off the serial chain.
    #     (r/z thirds of b_hh are already folded into bih_ref.)
    gi_ref[...] = (
        jnp.dot(x_ref[...], wih_ref[...], preferred_element_type=jnp.float32)
        + bih_ref[...]
    )

    whh = whh_ref[...]          # (Dp, 3*Dp) bf16 — MXU-native recurrent weight
    bhh_n = bhhn_ref[...]       # (1, Dp) f32   — n-gate hidden bias only
    h = h_ref[...]              # (B8, Dp) f32  — recurrence stays f32

    # (2) Inherently sequential recurrence: only h @ W_hh stays in the loop.
    #     chunk_len <= MAX_TIME_CHUNK and static -> full unroll.
    for t in range(chunk_len):
        gi = gi_ref[pl.ds(t * b_pad, b_pad), :]                       # (B8, 3*Dp)
        gh = jnp.dot(h.astype(jnp.bfloat16), whh,
                     preferred_element_type=jnp.float32)              # (B8, 3*Dp)
        # fused r/z sigmoid on a lane-contiguous 2*Dp slab (one EUP push)
        rz = jax.nn.sigmoid(gi[:, :2 * d_pad] + gh[:, :2 * d_pad])
        r = rz[:, :d_pad]
        z = rz[:, d_pad:]
        n = jnp.tanh(gi[:, 2 * d_pad:] + r * (gh[:, 2 * d_pad:] + bhh_n))
        h = (1.0 - z) * n + z * h
        out_ref[t] = h

    h_ref[...] = h


# ---------------------------------------------------------------------------
# Wrapper: pad PyTorch-layout params to a lane-dense layout and call the kernel
# ---------------------------------------------------------------------------
def _pad_gru_params(w_ih, w_hh, b_ih, b_hh, d, d_pad):
    """Zero-pad PyTorch GRU params (gates r,z,n stacked along rows) into a
    lane-dense right-multiply layout (d_pad, 3*d_pad), one 128-aligned block
    per gate.  The r/z thirds of b_hh are folded into b_ih; only the n-gate
    third of b_hh is kept separate (it is multiplied by r inside the cell)."""
    wih_p = jnp.zeros((d_pad, 3 * d_pad), jnp.float32)
    whh_p = jnp.zeros((d_pad, 3 * d_pad), jnp.float32)
    bih_p = jnp.zeros((3 * d_pad,), jnp.float32)
    bhhn_p = jnp.zeros((d_pad,), jnp.float32)
    for g in range(3):
        wih_p = wih_p.at[:d, g * d_pad:g * d_pad + d].set(w_ih[g * d:(g + 1) * d, :].T)
        whh_p = whh_p.at[:d, g * d_pad:g * d_pad + d].set(w_hh[g * d:(g + 1) * d, :].T)
        b = b_ih[g * d:(g + 1) * d]
        if g < 2:                       # fold r- and z-gate b_hh into b_ih
            b = b + b_hh[g * d:(g + 1) * d]
        bih_p = bih_p.at[g * d_pad:g * d_pad + d].set(b)
    bhhn_p = bhhn_p.at[:d].set(b_hh[2 * d:3 * d])
    return wih_p, whh_p, bih_p.reshape(1, -1), bhhn_p.reshape(1, -1)


def recurrent_positional_encoding(x, w_ih, w_hh, b_ih, b_hh):
    """Forward of RecurrentPositionalEncoding (a single-layer nn.GRU).

    x:    (S, B, D) f32
    w_ih: (3D, D)   PyTorch weight_ih_l0 (gates r, z, n)
    w_hh: (3D, D)   PyTorch weight_hh_l0
    b_ih: (3D,)     PyTorch bias_ih_l0
    b_hh: (3D,)     PyTorch bias_hh_l0
    Returns the same tuple as nn.GRU: (output (S, B, D), h_n (1, B, D)).
    """
    S, B, D = x.shape
    Dp = _round_up(D, LANE)
    B8 = _round_up(B, SUBLANE)
    Tc = min(S, MAX_TIME_CHUNK)
    Sp = _round_up(S, Tc)
    n_chunks = Sp // Tc

    wih_p, whh_p, bih_p, bhhn_p = _pad_gru_params(w_ih, w_hh, b_ih, b_hh, D, Dp)

    # Zero-pad x to (Sp, B8, Dp); padded timesteps / batch rows / channels are
    # sliced away below and never influence the real lanes.
    x_p = jnp.zeros((Sp, B8, Dp), jnp.float32).at[:S, :B, :D].set(x)
    # bf16 operands for the hoisted chunk matmul (MXU-native); f32 accumulation
    # inside the kernel.  NOTE: if tighter accuracy is needed for long
    # sequences, keep x/W_ih in f32 — the hoisted matmul is off the serial path.
    x2d = x_p.reshape(Sp * B8, Dp).astype(jnp.bfloat16)
    wih_bf16 = wih_p.astype(jnp.bfloat16)
    whh_bf16 = whh_p.astype(jnp.bfloat16)

    # VMEM budget (double-buffered blocks + scratch), with headroom.
    needed = (
        2 * (Dp * 3 * Dp * 2) * 2        # wih + whh (bf16), x2 buffers
        + (3 * Dp + Dp) * 4 * 2          # biases (f32), x2 buffers
        + 2 * Tc * B8 * Dp * 2           # x chunk (bf16), double-buffered
        + 2 * Tc * B8 * Dp * 4           # out chunk (f32), double-buffered
        + Tc * B8 * 3 * Dp * 4           # gi scratch (f32)
        + B8 * Dp * 4                    # h carry (f32)
    )
    vmem_limit = min(max(2 * needed + (1 << 20), 16 << 20), 64 << 20)

    out_p = pl.pallas_call(
        functools.partial(_gru_chunk_kernel, chunk_len=Tc, b_pad=B8),
        grid=(n_chunks,),
        in_specs=[
            pl.BlockSpec((Tc * B8, Dp), lambda c: (c, 0)),     # x chunk
            pl.BlockSpec((Dp, 3 * Dp), lambda c: (0, 0)),      # W_ih (bf16)
            pl.BlockSpec((Dp, 3 * Dp), lambda c: (0, 0)),      # W_hh (bf16)
            pl.BlockSpec((1, 3 * Dp), lambda c: (0, 0)),       # b_ih (+ folded b_hh r/z)
            pl.BlockSpec((1, Dp), lambda c: (0, 0)),           # b_hh n-gate
        ],
        out_specs=pl.BlockSpec((Tc, B8, Dp), lambda c: (c, 0, 0)),
        out_shape=jax.ShapeDtypeStruct((Sp, B8, Dp), jnp.float32),
        scratch_shapes=[
            pltpu.VMEM((Tc * B8, 3 * Dp), jnp.float32),        # gi per chunk
            pltpu.VMEM((B8, Dp), jnp.float32),                 # h carry
        ],
        compiler_params=pltpu.CompilerParams(
            dimension_semantics=("arbitrary",),                # h carried across chunks
            vmem_limit_bytes=int(vmem_limit),
        ),
    )(x2d, wih_bf16, whh_bf16, bih_p, bhhn_p)

    out = out_p[:S, :B, :D]
    h_n = out[-1][None]          # single-layer GRU: h_n == last output step
    return out, h_n


# ---------------------------------------------------------------------------
# Pure-JAX reference (f32) for correctness checking
# ---------------------------------------------------------------------------
def _gru_reference(x, w_ih, w_hh, b_ih, b_hh):
    S, B, D = x.shape

    def step(h, x_t):
        gi = x_t @ w_ih.T + b_ih
        gh = h @ w_hh.T + b_hh
        r = jax.nn.sigmoid(gi[:, :D] + gh[:, :D])
        z = jax.nn.sigmoid(gi[:, D:2 * D] + gh[:, D:2 * D])
        n = jnp.tanh(gi[:, 2 * D:] + r * gh[:, 2 * D:])
        h_new = (1.0 - z) * n + z * h
        return h_new, h_new

    h_last, ys = jax.lax.scan(step, jnp.zeros((B, D), jnp.float32), x)
    return ys, h_last[None]


# ---------------------------------------------------------------------------
if __name__ == "__main__":
    SEQ, BATCH, D_MODEL = 8, 2, 32

    key = jax.random.PRNGKey(0)
    kx, k1, k2, k3, k4 = jax.random.split(key, 5)
    x = jax.random.normal(kx, (SEQ, BATCH, D_MODEL), jnp.float32)

    bound = 1.0 / math.sqrt(D_MODEL)          # PyTorch nn.GRU default init range
    def u(k, shape):
        return jax.random.uniform(k, shape, jnp.float32, -bound, bound)

    w_ih = u(k1, (3 * D_MODEL, D_MODEL))
    w_hh = u(k2, (3 * D_MODEL, D_MODEL))
    b_ih = u(k3, (3 * D_MODEL,))
    b_hh = u(k4, (3 * D_MODEL,))

    fwd = jax.jit(recurrent_positional_encoding)
    out, h_n = jax.block_until_ready(fwd(x, w_ih, w_hh, b_ih, b_hh))

    assert out.shape == (SEQ, BATCH, D_MODEL)
    assert h_n.shape == (1, BATCH, D_MODEL)
    assert bool(jnp.all(jnp.isfinite(out)))
    assert bool(jnp.all(jnp.isfinite(h_n)))

    ref_out, ref_hn = _gru_reference(x, w_ih, w_hh, b_ih, b_hh)
    # loose tolerance accounts for bf16 operands in the input projection and W_hh
    assert bool(jnp.allclose(out, ref_out, atol=3e-2, rtol=3e-2))
    assert bool(jnp.allclose(h_n, ref_hn, atol=3e-2, rtol=3e-2))
    assert bool(jnp.allclose(h_n[0], out[-1], atol=1e-6))

    print("KERNEL_OK")
</pallas_src>

<mosaic_0001>
module attributes {stable_mosaic.version = 11 : i64} {
  func.func @_gru_chunk_kernel(%arg0: i32, %arg1: memref<64x128xbf16, #tpu.memory_space<vmem>>, %arg2: memref<128x384xbf16, #tpu.memory_space<vmem>>, %arg3: memref<128x384xbf16, #tpu.memory_space<vmem>>, %arg4: memref<1x384xf32, #tpu.memory_space<vmem>>, %arg5: memref<1x128xf32, #tpu.memory_space<vmem>>, %arg6: memref<8x8x128xf32, #tpu.memory_space<vmem>>, %arg7: memref<64x384xf32, #tpu.memory_space<vmem>>, %arg8: memref<8x128xf32, #tpu.memory_space<vmem>>) attributes {dimension_semantics = [#tpu.dimension_semantics<arbitrary>], iteration_bounds = array<i64: 1>, scalar_prefetch = 0 : i64, scratch_operands = 2 : i64, tpu.core_type = #tpu.core_type<tc>, window_params = [{transform_indices = @transform_0, window_bounds = array<i64: 64, 128>}, {pipeline_mode = #tpu.pipeline_mode<synchronous>, transform_indices = @transform_1, window_bounds = array<i64: 128, 384>}, {pipeline_mode = #tpu.pipeline_mode<synchronous>, transform_indices = @transform_2, window_bounds = array<i64: 128, 384>}, {pipeline_mode = #tpu.pipeline_mode<synchronous>, transform_indices = @transform_3, window_bounds = array<i64: 1, 384>}, {pipeline_mode = #tpu.pipeline_mode<synchronous>, transform_indices = @transform_4, window_bounds = array<i64: 1, 128>}, {transform_indices = @transform_5, window_bounds = array<i64: 8, 8, 128>}]} {
    %c0_i32 = arith.constant 0 : i32
    %0 = arith.cmpi eq, %arg0, %c0_i32 : i32
    %1 = arith.extui %0 : i1 to i32
    %c0_i32_0 = arith.constant 0 : i32
    %2 = arith.cmpi ne, %1, %c0_i32_0 : i32
    scf.if %2 {
      %cst_66 = arith.constant 0.000000e+00 : f32
      %238 = vector.broadcast %cst_66 : f32 to vector<8x128xf32>
      %c0_67 = arith.constant 0 : index
      %c0_68 = arith.constant 0 : index
      %239 = vector.load %arg8[%c0_67, %c0_68] : memref<8x128xf32, #tpu.memory_space<vmem>>, vector<8x128xf32>
      tpu.vector_store %arg8[%c0_67, %c0_68], %238 {strides = array<i32>} : memref<8x128xf32, #tpu.memory_space<vmem>>, vector<8x128xf32>,
    } else {
    }
    %c0 = arith.constant 0 : index
    %c0_1 = arith.constant 0 : index
    %3 = vector.load %arg1[%c0, %c0_1] : memref<64x128xbf16, #tpu.memory_space<vmem>>, vector<64x128xbf16>
    %c0_2 = arith.constant 0 : index
    %c0_3 = arith.constant 0 : index
    %4 = vector.load %arg2[%c0_2, %c0_3] : memref<128x384xbf16, #tpu.memory_space<vmem>>, vector<128x384xbf16>
    %cst = arith.constant dense<0.000000e+00> : vector<64x384xf32>
    %5 = tpu.matmul %3, %4, %cst {dimension_numbers = #tpu.dot_dimension_numbers<[1], [0], [0], [1], [0, 0, 1, 1], [], []>} : vector<64x128xbf16>, vector<128x384xbf16>, vector<64x384xf32> -> vector<64x384xf32>
    %c0_4 = arith.constant 0 : index
    %c0_5 = arith.constant 0 : index
    %6 = vector.load %arg4[%c0_4, %c0_5] : memref<1x384xf32, #tpu.memory_space<vmem>>, vector<1x384xf32>
    %7 = vector.broadcast %6 : vector<1x384xf32> to vector<64x384xf32>
    %8 = arith.addf %5, %7 : vector<64x384xf32>
    %c0_6 = arith.constant 0 : index
    %c0_7 = arith.constant 0 : index
    %9 = vector.load %arg7[%c0_6, %c0_7] : memref<64x384xf32, #tpu.memory_space<vmem>>, vector<64x384xf32>
    tpu.vector_store %arg7[%c0_6, %c0_7], %8 {strides = array<i32>} : memref<64x384xf32, #tpu.memory_space<vmem>>, vector<64x384xf32>,
    %c0_8 = arith.constant 0 : index
    %c0_9 = arith.constant 0 : index
    %10 = vector.load %arg3[%c0_8, %c0_9] : memref<128x384xbf16, #tpu.memory_space<vmem>>, vector<128x384xbf16>
    %c0_10 = arith.constant 0 : index
    %c0_11 = arith.constant 0 : index
    %11 = vector.load %arg5[%c0_10, %c0_11] : memref<1x128xf32, #tpu.memory_space<vmem>>, vector<1x128xf32>
    %c0_12 = arith.constant 0 : index
    %c0_13 = arith.constant 0 : index
    %12 = vector.load %arg8[%c0_12, %c0_13] : memref<8x128xf32, #tpu.memory_space<vmem>>, vector<8x128xf32>
    %c0_14 = arith.constant 0 : index
    %c0_15 = arith.constant 0 : index
    %13 = vector.load %arg7[%c0_14, %c0_15] : memref<64x384xf32, #tpu.memory_space<vmem>>, vector<8x384xf32>
    %14 = arith.truncf %12 : vector<8x128xf32> to vector<8x128xbf16>
    %cst_16 = arith.constant dense<0.000000e+00> : vector<8x384xf32>
    %15 = tpu.matmul %14, %10, %cst_16 {dimension_numbers = #tpu.dot_dimension_numbers<[1], [0], [0], [1], [0, 0, 1, 1], [], []>} : vector<8x128xbf16>, vector<128x384xbf16>, vector<8x384xf32> -> vector<8x384xf32>
    %16 = vector.extract_strided_slice %13 {offsets = [0, 0], sizes = [8, 256], strides = [1, 1]} : vector<8x384xf32> to vector<8x256xf32>
    %17 = vector.extract_strided_slice %15 {offsets = [0, 0], sizes = [8, 256], strides = [1, 1]} : vector<8x384xf32> to vector<8x256xf32>
    %18 = arith.addf %16, %17 : vector<8x256xf32>
    %19 = arith.negf %18 : vector<8x256xf32>
    %20 = math.exp %19 : vector<8x256xf32>
    %cst_17 = arith.constant 1.000000e+00 : f32
    %21 = vector.broadcast %cst_17 : f32 to vector<8x256xf32>
    %22 = arith.addf %21, %20 : vector<8x256xf32>
    %23 = arith.divf %21, %22 : vector<8x256xf32>
    %24 = vector.extract_strided_slice %23 {offsets = [0, 0], sizes = [8, 128], strides = [1, 1]} : vector<8x256xf32> to vector<8x128xf32>
    %25 = vector.extract_strided_slice %23 {offsets = [0, 128], sizes = [8, 128], strides = [1, 1]} : vector<8x256xf32> to vector<8x128xf32>
    %26 = vector.extract_strided_slice %13 {offsets = [0, 256], sizes = [8, 128], strides = [1, 1]} : vector<8x384xf32> to vector<8x128xf32>
    %27 = vector.extract_strided_slice %15 {offsets = [0, 256], sizes = [8, 128], strides = [1, 1]} : vector<8x384xf32> to vector<8x128xf32>
    %28 = vector.broadcast %11 : vector<1x128xf32> to vector<8x128xf32>
    %29 = arith.addf %27, %28 : vector<8x128xf32>
    %30 = arith.mulf %24, %29 : vector<8x128xf32>
    %31 = arith.addf %26, %30 : vector<8x128xf32>
    %32 = math.tanh %31 : vector<8x128xf32>
    %cst_18 = arith.constant 1.000000e+00 : f32
    %33 = vector.broadcast %cst_18 : f32 to vector<8x128xf32>
    %34 = arith.subf %33, %25 : vector<8x128xf32>
    %35 = arith.mulf %34, %32 : vector<8x128xf32>
    %36 = arith.mulf %25, %12 : vector<8x128xf32>
    %37 = arith.addf %35, %36 : vector<8x128xf32>
    %c0_19 = arith.constant 0 : index
    %c0_20 = arith.constant 0 : index
    %c0_21 = arith.constant 0 : index
    %38 = vector.load %arg6[%c0_19, %c0_20, %c0_21] : memref<8x8x128xf32, #tpu.memory_space<vmem>>, vector<1x8x128xf32>
    %39 = vector.shape_cast %38 : vector<1x8x128xf32> to vector<8x128xf32>
    %40 = vector.shape_cast %37 : vector<8x128xf32> to vector<1x8x128xf32>
    tpu.vector_store %arg6[%c0_19, %c0_20, %c0_21], %40 {strides = array<i32>} : memref<8x8x128xf32, #tpu.memory_space<vmem>>, vector<1x8x128xf32>,
    %c8 = arith.constant 8 : index
    %c0_22 = arith.constant 0 : index
    %41 = vector.load %arg7[%c8, %c0_22] : memref<64x384xf32, #tpu.memory_space<vmem>>, vector<8x384xf32>
    %42 = arith.truncf %37 : vector<8x128xf32> to vector<8x128xbf16>
    %cst_23 = arith.constant dense<0.000000e+00> : vector<8x384xf32>
    %43 = tpu.matmul %42, %10, %cst_23 {dimension_numbers = #tpu.dot_dimension_numbers<[1], [0], [0], [1], [0, 0, 1, 1], [], []>} : vector<8x128xbf16>, vector<128x384xbf16>, vector<8x384xf32> -> vector<8x384xf32>
    %44 = vector.extract_strided_slice %41 {offsets = [0, 0], sizes = [8, 256], strides = [1, 1]} : vector<8x384xf32> to vector<8x256xf32>
    %45 = vector.extract_strided_slice %43 {offsets = [0, 0], sizes = [8, 256], strides = [1, 1]} : vector<8x384xf32> to vector<8x256xf32>
    %46 = arith.addf %44, %45 : vector<8x256xf32>
    %47 = arith.negf %46 : vector<8x256xf32>
    %48 = math.exp %47 : vector<8x256xf32>
    %cst_24 = arith.constant 1.000000e+00 : f32
    %49 = vector.broadcast %cst_24 : f32 to vector<8x256xf32>
    %50 = arith.addf %49, %48 : vector<8x256xf32>
    %51 = arith.divf %49, %50 : vector<8x256xf32>
    %52 = vector.extract_strided_slice %51 {offsets = [0, 0], sizes = [8, 128], strides = [1, 1]} : vector<8x256xf32> to vector<8x128xf32>
    %53 = vector.extract_strided_slice %51 {offsets = [0, 128], sizes = [8, 128], strides = [1, 1]} : vector<8x256xf32> to vector<8x128xf32>
    %54 = vector.extract_strided_slice %41 {offsets = [0, 256], sizes = [8, 128], strides = [1, 1]} : vector<8x384xf32> to vector<8x128xf32>
    %55 = vector.extract_strided_slice %43 {offsets = [0, 256], sizes = [8, 128], strides = [1, 1]} : vector<8x384xf32> to vector<8x128xf32>
    %56 = vector.broadcast %11 : vector<1x128xf32> to vector<8x128xf32>
    %57 = arith.addf %55, %56 : vector<8x128xf32>
    %58 = arith.mulf %52, %57 : vector<8x128xf32>
    %59 = arith.addf %54, %58 : vector<8x128xf32>
    %60 = math.tanh %59 : vector<8x128xf32>
    %cst_25 = arith.constant 1.000000e+00 : f32
    %61 = vector.broadcast %cst_25 : f32 to vector<8x128xf32>
    %62 = arith.subf %61, %53 : vector<8x128xf32>
    %63 = arith.mulf %62, %60 : vector<8x128xf32>
    %64 = arith.mulf %53, %37 : vector<8x128xf32>
    %65 = arith.addf %63, %64 : vector<8x128xf32>
    %c1 = arith.constant 1 : index
    %c0_26 = arith.constant 0 : index
    %c0_27 = arith.constant 0 : index
    %66 = vector.load %arg6[%c1, %c0_26, %c0_27] : memref<8x8x128xf32, #tpu.memory_space<vmem>>, vector<1x8x128xf32>
    %67 = vector.shape_cast %66 : vector<1x8x128xf32> to vector<8x128xf32>
    %68 = vector.shape_cast %65 : vector<8x128xf32> to vector<1x8x128xf32>
    tpu.vector_store %arg6[%c1, %c0_26, %c0_27], %68 {strides = array<i32>} : memref<8x8x128xf32, #tpu.memory_space<vmem>>, vector<1x8x128xf32>,
    %c16 = arith.constant 16 : index
    %c0_28 = arith.constant 0 : index
    %69 = vector.load %arg7[%c16, %c0_28] : memref<64x384xf32, #tpu.memory_space<vmem>>, vector<8x384xf32>
    %70 = arith.truncf %65 : vector<8x128xf32> to vector<8x128xbf16>
    %cst_29 = arith.constant dense<0.000000e+00> : vector<8x384xf32>
    %71 = tpu.matmul %70, %10, %cst_29 {dimension_numbers = #tpu.dot_dimension_numbers<[1], [0], [0], [1], [0, 0, 1, 1], [], []>} : vector<8x128xbf16>, vector<128x384xbf16>, vector<8x384xf32> -> vector<8x384xf32>
    %72 = vector.extract_strided_slice %69 {offsets = [0, 0], sizes = [8, 256], strides = [1, 1]} : vector<8x384xf32> to vector<8x256xf32>
    %73 = vector.extract_strided_slice %71 {offsets = [0, 0], sizes = [8, 256], strides = [1, 1]} : vector<8x384xf32> to vector<8x256xf32>
    %74 = arith.addf %72, %73 : vector<8x256xf32>
    %75 = arith.negf %74 : vector<8x256xf32>
    %76 = math.exp %75 : vector<8x256xf32>
    %cst_30 = arith.constant 1.000000e+00 : f32
    %77 = vector.broadcast %cst_30 : f32 to vector<8x256xf32>
    %78 = arith.addf %77, %76 : vector<8x256xf32>
    %79 = arith.divf %77, %78 : vector<8x256xf32>
    %80 = vector.extract_strided_slice %79 {offsets = [0, 0], sizes = [8, 128], strides = [1, 1]} : vector<8x256xf32> to vector<8x128xf32>
    %81 = vector.extract_strided_slice %79 {offsets = [0, 128], sizes = [8, 128], strides = [1, 1]} : vector<8x256xf32> to vector<8x128xf32>
    %82 = vector.extract_strided_slice %69 {offsets = [0, 256], sizes = [8, 128], strides = [1, 1]} : vector<8x384xf32> to vector<8x128xf32>
    %83 = vector.extract_strided_slice %71 {offsets = [0, 256], sizes = [8, 128], strides = [1, 1]} : vector<8x384xf32> to vector<8x128xf32>
    %84 = vector.broadcast %11 : vector<1x128xf32> to vector<8x128xf32>
    %85 = arith.addf %83, %84 : vector<8x128xf32>
    %86 = arith.mulf %80, %85 : vector<8x128xf32>
    %87 = arith.addf %82, %86 : vector<8x128xf32>
    %88 = math.tanh %87 : vector<8x128xf32>
    %cst_31 = arith.constant 1.000000e+00 : f32
    %89 = vector.broadcast %cst_31 : f32 to vector<8x128xf32>
    %90 = arith.subf %89, %81 : vector<8x128xf32>
    %91 = arith.mulf %90, %88 : vector<8x128xf32>
    %92 = arith.mulf %81, %65 : vector<8x128xf32>
    %93 = arith.addf %91, %92 : vector<8x128xf32>
    %c2 = arith.constant 2 : index
    %c0_32 = arith.constant 0 : index
    %c0_33 = arith.constant 0 : index
    %94 = vector.load %arg6[%c2, %c0_32, %c0_33] : memref<8x8x128xf32, #tpu.memory_space<vmem>>, vector<1x8x128xf32>
    %95 = vector.shape_cast %94 : vector<1x8x128xf32> to vector<8x128xf32>
    %96 = vector.shape_cast %93 : vector<8x128xf32> to vector<1x8x128xf32>
    tpu.vector_store %arg6[%c2, %c0_32, %c0_33], %96 {strides = array<i32>} : memref<8x8x128xf32, #tpu.memory_space<vmem>>, vector<1x8x128xf32>,
    %c24 = arith.constant 24 : index
    %c0_34 = arith.constant 0 : index
    %97 = vector.load %arg7[%c24, %c0_34] : memref<64x384xf32, #tpu.memory_space<vmem>>, vector<8x384xf32>
    %98 = arith.truncf %93 : vector<8x128xf32> to vector<8x128xbf16>
    %cst_35 = arith.constant dense<0.000000e+00> : vector<8x384xf32>
    %99 = tpu.matmul %98, %10, %cst_35 {dimension_numbers = #tpu.dot_dimension_numbers<[1], [0], [0], [1], [0, 0, 1, 1], [], []>} : vector<8x128xbf16>, vector<128x384xbf16>, vector<8x384xf32> -> vector<8x384xf32>
    %100 = vector.extract_strided_slice %97 {offsets = [0, 0], sizes = [8, 256], strides = [1, 1]} : vector<8x384xf32> to vector<8x256xf32>
    %101 = vector.extract_strided_slice %99 {offsets = [0, 0], sizes = [8, 256], strides = [1, 1]} : vector<8x384xf32> to vector<8x256xf32>
    %102 = arith.addf %100, %101 : vector<8x256xf32>
    %103 = arith.negf %102 : vector<8x256xf32>
    %104 = math.exp %103 : vector<8x256xf32>
    %cst_36 = arith.constant 1.000000e+00 : f32
    %105 = vector.broadcast %cst_36 : f32 to vector<8x256xf32>
    %106 = arith.addf %105, %104 : vector<8x256xf32>
    %107 = arith.divf %105, %106 : vector<8x256xf32>
    %108 = vector.extract_strided_slice %107 {offsets = [0, 0], sizes = [8, 128], strides = [1, 1]} : vector<8x256xf32> to vector<8x128xf32>
    %109 = vector.extract_strided_slice %107 {offsets = [0, 128], sizes = [8, 128], strides = [1, 1]} : vector<8x256xf32> to vector<8x128xf32>
    %110 = vector.extract_strided_slice %97 {offsets = [0, 256], sizes = [8, 128], strides = [1, 1]} : vector<8x384xf32> to vector<8x128xf32>
    %111 = vector.extract_strided_slice %99 {offsets = [0, 256], sizes = [8, 128], strides = [1, 1]} : vector<8x384xf32> to vector<8x128xf32>
    %112 = vector.broadcast %11 : vector<1x128xf32> to vector<8x128xf32>
    %113 = arith.addf %111, %112 : vector<8x128xf32>
    %114 = arith.mulf %108, %113 : vector<8x128xf32>
    %115 = arith.addf %110, %114 : vector<8x128xf32>
    %116 = math.tanh %115 : vector<8x128xf32>
    %cst_37 = arith.constant 1.000000e+00 : f32
    %117 = vector.broadcast %cst_37 : f32 to vector<8x128xf32>
    %118 = arith.subf %117, %109 : vector<8x128xf32>
    %119 = arith.mulf %118, %116 : vector<8x128xf32>
    %120 = arith.mulf %109, %93 : vector<8x128xf32>
    %121 = arith.addf %119, %120 : vector<8x128xf32>
    %c3 = arith.constant 3 : index
    %c0_38 = arith.constant 0 : index
    %c0_39 = arith.constant 0 : index
    %122 = vector.load %arg6[%c3, %c0_38, %c0_39] : memref<8x8x128xf32, #tpu.memory_space<vmem>>, vector<1x8x128xf32>
    %123 = vector.shape_cast %122 : vector<1x8x128xf32> to vector<8x128xf32>
    %124 = vector.shape_cast %121 : vector<8x128xf32> to vector<1x8x128xf32>
    tpu.vector_store %arg6[%c3, %c0_38, %c0_39], %124 {strides = array<i32>} : memref<8x8x128xf32, #tpu.memory_space<vmem>>, vector<1x8x128xf32>,
    %c32 = arith.constant 32 : index
    %c0_40 = arith.constant 0 : index
    %125 = vector.load %arg7[%c32, %c0_40] : memref<64x384xf32, #tpu.memory_space<vmem>>, vector<8x384xf32>
    %126 = arith.truncf %121 : vector<8x128xf32> to vector<8x128xbf16>
    %cst_41 = arith.constant dense<0.000000e+00> : vector<8x384xf32>
    %127 = tpu.matmul %126, %10, %cst_41 {dimension_numbers = #tpu.dot_dimension_numbers<[1], [0], [0], [1], [0, 0, 1, 1], [], []>} : vector<8x128xbf16>, vector<128x384xbf16>, vector<8x384xf32> -> vector<8x384xf32>
    %128 = vector.extract_strided_slice %125 {offsets = [0, 0], sizes = [8, 256], strides = [1, 1]} : vector<8x384xf32> to vector<8x256xf32>
    %129 = vector.extract_strided_slice %127 {offsets = [0, 0], sizes = [8, 256], strides = [1, 1]} : vector<8x384xf32> to vector<8x256xf32>
    %130 = arith.addf %128, %129 : vector<8x256xf32>
    %131 = arith.negf %130 : vector<8x256xf32>
    %132 = math.exp %131 : vector<8x256xf32>
    %cst_42 = arith.constant 1.000000e+00 : f32
    %133 = vector.broadcast %cst_42 : f32 to vector<8x256xf32>
    %134 = arith.addf %133, %132 : vector<8x256xf32>
    %135 = arith.divf %133, %134 : vector<8x256xf32>
    %136 = vector.extract_strided_slice %135 {offsets = [0, 0], sizes = [8, 128], strides = [1, 1]} : vector<8x256xf32> to vector<8x128xf32>
    %137 = vector.extract_strided_slice %135 {offsets = [0, 128], sizes = [8, 128], strides = [1, 1]} : vector<8x256xf32> to vector<8x128xf32>
    %138 = vector.extract_strided_slice %125 {offsets = [0, 256], sizes = [8, 128], strides = [1, 1]} : vector<8x384xf32> to vector<8x128xf32>
    %139 = vector.extract_strided_slice %127 {offsets = [0, 256], sizes = [8, 128], strides = [1, 1]} : vector<8x384xf32> to vector<8x128xf32>
    %140 = vector.broadcast %11 : vector<1x128xf32> to vector<8x128xf32>
    %141 = arith.addf %139, %140 : vector<8x128xf32>
    %142 = arith.mulf %136, %141 : vector<8x128xf32>
    %143 = arith.addf %138, %142 : vector<8x128xf32>
    %144 = math.tanh %143 : vector<8x128xf32>
    %cst_43 = arith.constant 1.000000e+00 : f32
    %145 = vector.broadcast %cst_43 : f32 to vector<8x128xf32>
    %146 = arith.subf %145, %137 : vector<8x128xf32>
    %147 = arith.mulf %146, %144 : vector<8x128xf32>
    %148 = arith.mulf %137, %121 : vector<8x128xf32>
    %149 = arith.addf %147, %148 : vector<8x128xf32>
    %c4 = arith.constant 4 : index
    %c0_44 = arith.constant 0 : index
    %c0_45 = arith.constant 0 : index
    %150 = vector.load %arg6[%c4, %c0_44, %c0_45] : memref<8x8x128xf32, #tpu.memory_space<vmem>>, vector<1x8x128xf32>
    %151 = vector.shape_cast %150 : vector<1x8x128xf32> to vector<8x128xf32>
    %152 = vector.shape_cast %149 : vector<8x128xf32> to vector<1x8x128xf32>
    tpu.vector_store %arg6[%c4, %c0_44, %c0_45], %152 {strides = array<i32>} : memref<8x8x128xf32, #tpu.memory_space<vmem>>, vector<1x8x128xf32>,
    %c40 = arith.constant 40 : index
    %c0_46 = arith.constant 0 : index
    %153 = vector.load %arg7[%c40, %c0_46] : memref<64x384xf32, #tpu.memory_space<vmem>>, vector<8x384xf32>
    %154 = arith.truncf %149 : vector<8x128xf32> to vector<8x128xbf16>
    %cst_47 = arith.constant dense<0.000000e+00> : vector<8x384xf32>
    %155 = tpu.matmul %154, %10, %cst_47 {dimension_numbers = #tpu.dot_dimension_numbers<[1], [0], [0], [1], [0, 0, 1, 1], [], []>} : vector<8x128xbf16>, vector<128x384xbf16>, vector<8x384xf32> -> vector<8x384xf32>
    %156 = vector.extract_strided_slice %153 {offsets = [0, 0], sizes = [8, 256], strides = [1, 1]} : vector<8x384xf32> to vector<8x256xf32>
    %157 = vector.extract_strided_slice %155 {offsets = [0, 0], sizes = [8, 256], strides = [1, 1]} : vector<8x384xf32> to vector<8x256xf32>
    %158 = arith.addf %156, %157 : vector<8x256xf32>
    %159 = arith.negf %158 : vector<8x256xf32>
    %160 = math.exp %159 : vector<8x256xf32>
    %cst_48 = arith.constant 1.000000e+00 : f32
    %161 = vector.broadcast %cst_48 : f32 to vector<8x256xf32>
    %162 = arith.addf %161, %160 : vector<8x256xf32>
    %163 = arith.divf %161, %162 : vector<8x256xf32>
    %164 = vector.extract_strided_slice %163 {offsets = [0, 0], sizes = [8, 128], strides = [1, 1]} : vector<8x256xf32> to vector<8x128xf32>
    %165 = vector.extract_strided_slice %163 {offsets = [0, 128], sizes = [8, 128], strides = [1, 1]} : vector<8x256xf32> to vector<8x128xf32>
    %166 = vector.extract_strided_slice %153 {offsets = [0, 256], sizes = [8, 128], strides = [1, 1]} : vector<8x384xf32> to vector<8x128xf32>
    %167 = vector.extract_strided_slice %155 {offsets = [0, 256], sizes = [8, 128], strides = [1, 1]} : vector<8x384xf32> to vector<8x128xf32>
    %168 = vector.broadcast %11 : vector<1x128xf32> to vector<8x128xf32>
    %169 = arith.addf %167, %168 : vector<8x128xf32>
    %170 = arith.mulf %164, %169 : vector<8x128xf32>
    %171 = arith.addf %166, %170 : vector<8x128xf32>
    %172 = math.tanh %171 : vector<8x128xf32>
    %cst_49 = arith.constant 1.000000e+00 : f32
    %173 = vector.broadcast %cst_49 : f32 to vector<8x128xf32>
    %174 = arith.subf %173, %165 : vector<8x128xf32>
    %175 = arith.mulf %174, %172 : vector<8x128xf32>
    %176 = arith.mulf %165, %149 : vector<8x128xf32>
    %177 = arith.addf %175, %176 : vector<8x128xf32>
    %c5 = arith.constant 5 : index
    %c0_50 = arith.constant 0 : index
    %c0_51 = arith.constant 0 : index
    %178 = vector.load %arg6[%c5, %c0_50, %c0_51] : memref<8x8x128xf32, #tpu.memory_space<vmem>>, vector<1x8x128xf32>
    %179 = vector.shape_cast %178 : vector<1x8x128xf32> to vector<8x128xf32>
    %180 = vector.shape_cast %177 : vector<8x128xf32> to vector<1x8x128xf32>
    tpu.vector_store %arg6[%c5, %c0_50, %c0_51], %180 {strides = array<i32>} : memref<8x8x128xf32, #tpu.memory_space<vmem>>, vector<1x8x128xf32>,
    %c48 = arith.constant 48 : index
    %c0_52 = arith.constant 0 : index
    %181 = vector.load %arg7[%c48, %c0_52] : memref<64x384xf32, #tpu.memory_space<vmem>>, vector<8x384xf32>
    %182 = arith.truncf %177 : vector<8x128xf32> to vector<8x128xbf16>
    %cst_53 = arith.constant dense<0.000000e+00> : vector<8x384xf32>
    %183 = tpu.matmul %182, %10, %cst_53 {dimension_numbers = #tpu.dot_dimension_numbers<[1], [0], [0], [1], [0, 0, 1, 1], [], []>} : vector<8x128xbf16>, vector<128x384xbf16>, vector<8x384xf32> -> vector<8x384xf32>
    %184 = vector.extract_strided_slice %181 {offsets = [0, 0], sizes = [8, 256], strides = [1, 1]} : vector<8x384xf32> to vector<8x256xf32>
    %185 = vector.extract_strided_slice %183 {offsets = [0, 0], sizes = [8, 256], strides = [1, 1]} : vector<8x384xf32> to vector<8x256xf32>
    %186 = arith.addf %184, %185 : vector<8x256xf32>
    %187 = arith.negf %186 : vector<8x256xf32>
    %188 = math.exp %187 : vector<8x256xf32>
    %cst_54 = arith.constant 1.000000e+00 : f32
    %189 = vector.broadcast %cst_54 : f32 to vector<8x256xf32>
    %190 = arith.addf %189, %188 : vector<8x256xf32>
    %191 = arith.divf %189, %190 : vector<8x256xf32>
    %192 = vector.extract_strided_slice %191 {offsets = [0, 0], sizes = [8, 128], strides = [1, 1]} : vector<8x256xf32> to vector<8x128xf32>
    %193 = vector.extract_strided_slice %191 {offsets = [0, 128], sizes = [8, 128], strides = [1, 1]} : vector<8x256xf32> to vector<8x128xf32>
    %194 = vector.extract_strided_slice %181 {offsets = [0, 256], sizes = [8, 128], strides = [1, 1]} : vector<8x384xf32> to vector<8x128xf32>
    %195 = vector.extract_strided_slice %183 {offsets = [0, 256], sizes = [8, 128], strides = [1, 1]} : vector<8x384xf32> to vector<8x128xf32>
    %196 = vector.broadcast %11 : vector<1x128xf32> to vector<8x128xf32>
    %197 = arith.addf %195, %196 : vector<8x128xf32>
    %198 = arith.mulf %192, %197 : vector<8x128xf32>
    %199 = arith.addf %194, %198 : vector<8x128xf32>
    %200 = math.tanh %199 : vector<8x128xf32>
    %cst_55 = arith.constant 1.000000e+00 : f32
    %201 = vector.broadcast %cst_55 : f32 to vector<8x128xf32>
    %202 = arith.subf %201, %193 : vector<8x128xf32>
    %203 = arith.mulf %202, %200 : vector<8x128xf32>
    %204 = arith.mulf %193, %177 : vector<8x128xf32>
    %205 = arith.addf %203, %204 : vector<8x128xf32>
    %c6 = arith.constant 6 : index
    %c0_56 = arith.constant 0 : index
    %c0_57 = arith.constant 0 : index
    %206 = vector.load %arg6[%c6, %c0_56, %c0_57] : memref<8x8x128xf32, #tpu.memory_space<vmem>>, vector<1x8x128xf32>
    %207 = vector.shape_cast %206 : vector<1x8x128xf32> to vector<8x128xf32>
    %208 = vector.shape_cast %205 : vector<8x128xf32> to vector<1x8x128xf32>
    tpu.vector_store %arg6[%c6, %c0_56, %c0_57], %208 {strides = array<i32>} : memref<8x8x128xf32, #tpu.memory_space<vmem>>, vector<1x8x128xf32>,
    %c56 = arith.constant 56 : index
    %c0_58 = arith.constant 0 : index
    %209 = vector.load %arg7[%c56, %c0_58] : memref<64x384xf32, #tpu.memory_space<vmem>>, vector<8x384xf32>
    %210 = arith.truncf %205 : vector<8x128xf32> to vector<8x128xbf16>
    %cst_59 = arith.constant dense<0.000000e+00> : vector<8x384xf32>
    %211 = tpu.matmul %210, %10, %cst_59 {dimension_numbers = #tpu.dot_dimension_numbers<[1], [0], [0], [1], [0, 0, 1, 1], [], []>} : vector<8x128xbf16>, vector<128x384xbf16>, vector<8x384xf32> -> vector<8x384xf32>
    %212 = vector.extract_strided_slice %209 {offsets = [0, 0], sizes = [8, 256], strides = [1, 1]} : vector<8x384xf32> to vector<8x256xf32>
    %213 = vector.extract_strided_slice %211 {offsets = [0, 0], sizes = [8, 256], strides = [1, 1]} : vector<8x384xf32> to vector<8x256xf32>
    %214 = arith.addf %212, %213 : vector<8x256xf32>
    %215 = arith.negf %214 : vector<8x256xf32>
    %216 = math.exp %215 : vector<8x256xf32>
    %cst_60 = arith.constant 1.000000e+00 : f32
    %217 = vector.broadcast %cst_60 : f32 to vector<8x256xf32>
    %218 = arith.addf %217, %216 : vector<8x256xf32>
    %219 = arith.divf %217, %218 : vector<8x256xf32>
    %220 = vector.extract_strided_slice %219 {offsets = [0, 0], sizes = [8, 128], strides = [1, 1]} : vector<8x256xf32> to vector<8x128xf32>
    %221 = vector.extract_strided_slice %219 {offsets = [0, 128], sizes = [8, 128], strides = [1, 1]} : vector<8x256xf32> to vector<8x128xf32>
    %222 = vector.extract_strided_slice %209 {offsets = [0, 256], sizes = [8, 128], strides = [1, 1]} : vector<8x384xf32> to vector<8x128xf32>
    %223 = vector.extract_strided_slice %211 {offsets = [0, 256], sizes = [8, 128], strides = [1, 1]} : vector<8x384xf32> to vector<8x128xf32>
    %224 = vector.broadcast %11 : vector<1x128xf32> to vector<8x128xf32>
    %225 = arith.addf %223, %224 : vector<8x128xf32>
    %226 = arith.mulf %220, %225 : vector<8x128xf32>
    %227 = arith.addf %222, %226 : vector<8x128xf32>
    %228 = math.tanh %227 : vector<8x128xf32>
    %cst_61 = arith.constant 1.000000e+00 : f32
    %229 = vector.broadcast %cst_61 : f32 to vector<8x128xf32>
    %230 = arith.subf %229, %221 : vector<8x128xf32>
    %231 = arith.mulf %230, %228 : vector<8x128xf32>
    %232 = arith.mulf %221, %205 : vector<8x128xf32>
    %233 = arith.addf %231, %232 : vector<8x128xf32>
    %c7 = arith.constant 7 : index
    %c0_62 = arith.constant 0 : index
    %c0_63 = arith.constant 0 : index
    %234 = vector.load %arg6[%c7, %c0_62, %c0_63] : memref<8x8x128xf32, #tpu.memory_space<vmem>>, vector<1x8x128xf32>
    %235 = vector.shape_cast %234 : vector<1x8x128xf32> to vector<8x128xf32>
    %236 = vector.shape_cast %233 : vector<8x128xf32> to vector<1x8x128xf32>
    tpu.vector_store %arg6[%c7, %c0_62, %c0_63], %236 {strides = array<i32>} : memref<8x8x128xf32, #tpu.memory_space<vmem>>, vector<1x8x128xf32>,
    %c0_64 = arith.constant 0 : index
    %c0_65 = arith.constant 0 : index
    %237 = vector.load %arg8[%c0_64, %c0_65] : memref<8x128xf32, #tpu.memory_space<vmem>>, vector<8x128xf32>
    tpu.vector_store %arg8[%c0_64, %c0_65], %233 {strides = array<i32>} : memref<8x128xf32, #tpu.memory_space<vmem>>, vector<8x128xf32>,
    return
  }
  func.func @transform_0(%arg0: i32) -> (i32, i32) {
    %c0_i32 = arith.constant 0 : i32
    %c0_i32_0 = arith.constant 0 : i32
    return %arg0, %c0_i32 : i32, i32
  }
  func.func @transform_1(%arg0: i32) -> (i32, i32) {
    %c0_i32 = arith.constant 0 : i32
    %c0_i32_0 = arith.constant 0 : i32
    %c0_i32_1 = arith.constant 0 : i32
    return %c0_i32, %c0_i32_0 : i32, i32
  }
  func.func @transform_2(%arg0: i32) -> (i32, i32) {
    %c0_i32 = arith.constant 0 : i32
    %c0_i32_0 = arith.constant 0 : i32
    %c0_i32_1 = arith.constant 0 : i32
    return %c0_i32, %c0_i32_0 : i32, i32
  }
  func.func @transform_3(%arg0: i32) -> (i32, i32) {
    %c0_i32 = arith.constant 0 : i32
    %c0_i32_0 = arith.constant 0 : i32
    %c0_i32_1 = arith.constant 0 : i32
    return %c0_i32, %c0_i32_0 : i32, i32
  }
  func.func @transform_4(%arg0: i32) -> (i32, i32) {
    %c0_i32 = arith.constant 0 : i32
    %c0_i32_0 = arith.constant 0 : i32
    %c0_i32_1 = arith.constant 0 : i32
    return %c0_i32, %c0_i32_0 : i32, i32
  }
  func.func @transform_5(%arg0: i32) -> (i32, i32, i32) {
    %c0_i32 = arith.constant 0 : i32
    %c0_i32_0 = arith.constant 0 : i32
    %c0_i32_1 = arith.constant 0 : i32
    return %arg0, %c0_i32, %c0_i32_0 : i32, i32, i32
  }
}

</mosaic_0001>

<llo_original>
// kernel: recurrent_positional_encoding.1
$region0: #{recurrent_positional_encoding.1}
  #allocation0 [shape = 'u32[]', space=smem, size = 0x4, offset = 0x4, fixed_abs, tag = 'smem constant byte address 0x4 - core index']
  #allocation1 [shape = 'u32[144,128]{1,0:T(1,128)}', space=vmem, size = 0x12000, scoped, tag = 'internal scratch']
  #allocation2 [shape = 'f32[64,384]{1,0:T(8,128)}', space=vmem, size = 0x18000, scoped, tag = 'scratch operand']
  #allocation3 [shape = 'f32[8,128]{1,0:T(8,128)}', space=vmem, size = 0x1000, scoped, tag = 'scratch operand']
  %s0 = inlined_call_operand.vmem [shape: bf16[64,128], index: 0, kind: input, shape index: {}]
  %s1 = inlined_call_operand.vmem [shape: bf16[128,384], index: 1, kind: input, shape index: {}]
  %s2 = inlined_call_operand.vmem [shape: bf16[128,384], index: 2, kind: input, shape index: {}]
  %s3 = inlined_call_operand.vmem [shape: f32[1,384], index: 3, kind: input, shape index: {}]
  %s4 = inlined_call_operand.vmem [shape: f32[1,128], index: 4, kind: input, shape index: {}]
  %s5 = inlined_call_operand.vmem [shape: f32[8,8,128], index: 5, kind: output, shape index: {}]
  %s6 = sld [smem:[#allocation0]]
  $region34: #{recurrent_positional_encoding.1} parent=0
    _
  %s8 = ssub.s32 1, %s6
  %s9 = scalar_select 0, %s8, %s6
  // Predicated region
  $region2: #{recurrent_positional_encoding.1} parent=0 // pred_check
    _
  $region3: #{recurrent_positional_encoding.1} parent=0 // pred_check_branch
    %11 = sbr.rel (0) target = $region5
  $region4: #{recurrent_positional_encoding.1} parent=0 // pred_region
    _
  $region5: #{recurrent_positional_encoding.1} parent=0 // pred_fallthru
    _
  // Predicated region
  $region6: #{recurrent_positional_encoding.1} parent=0 // pred_check
    _
  $region7: #{recurrent_positional_encoding.1} parent=0 // pred_check_branch
    %13 = sbr.rel (0) target = $region9
  $region8: #{recurrent_positional_encoding.1} parent=0 // pred_region
    _
  $region9: #{recurrent_positional_encoding.1} parent=0 // pred_fallthru
    _
  // Predicated region
  $region10: #{recurrent_positional_encoding.1} parent=0 // pred_check
    _
  $region11: #{recurrent_positional_encoding.1} parent=0 // pred_check_branch
    %15 = sbr.rel (0) target = $region13
  $region12: #{recurrent_positional_encoding.1} parent=0 // pred_region
    _
  $region13: #{recurrent_positional_encoding.1} parent=0 // pred_fallthru
    _
  // Predicated region
  $region14: #{recurrent_positional_encoding.1} parent=0 // pred_check
    _
  $region15: #{recurrent_positional_encoding.1} parent=0 // pred_check_branch
    %17 = sbr.rel (0) target = $region17
  $region16: #{recurrent_positional_encoding.1} parent=0 // pred_region
    _
  $region17: #{recurrent_positional_encoding.1} parent=0 // pred_fallthru
    _
  // Predicated region
  $region18: #{recurrent_positional_encoding.1} parent=0 // pred_check
    _
  $region19: #{recurrent_positional_encoding.1} parent=0 // pred_check_branch
    %19 = sbr.rel (0) target = $region21
  $region20: #{recurrent_positional_encoding.1} parent=0 // pred_region
    _
  $region21: #{recurrent_positional_encoding.1} parent=0 // pred_fallthru
    _
  %p21 = scmp.eq.s32.totalorder 0, 0
  // Predicated region
  $region22: #{recurrent_positional_encoding.1} parent=0 // pred_check
    %p22 = pneg %p21
  $region23: #{recurrent_positional_encoding.1} parent=0 // pred_check_branch
    %24 = sbr.rel (%p22) target = $region25
  $region24: #{recurrent_positional_encoding.1} parent=0 // pred_region
    %25 = vst [vmem:[#allocation3] sm:$0xff] 0.0
  $region25: #{recurrent_positional_encoding.1} parent=0 // pred_fallthru
    _
  %v26 = vld [vmem:[%s0] sm:$0xf]
  %v27 = vld [vmem:[%s0 + $0x4] sm:$0xf]
  %v28 = vld [vmem:[%s0 + $0x8] sm:$0xf]
  %v29 = vld [vmem:[%s0 + $0xc] sm:$0xf]
  %v30 = vld [vmem:[%s0 + $0x10] sm:$0xf]
  %v31 = vld [vmem:[%s0 + $0x14] sm:$0xf]
  %v32 = vld [vmem:[%s0 + $0x18] sm:$0xf]
  %v33 = vld [vmem:[%s0 + $0x1c] sm:$0xf]
  %v34 = vld [vmem:[%s1] sm:$0xff]
  %v35 = vld [vmem:[%s1 + $0x8] sm:$0xf]
  %v36 = vld [vmem:[%s1 + $0xc] sm:$0xff]
  %v37 = vld [vmem:[%s1 + $0x14] sm:$0xf]
  %v38 = vld [vmem:[%s1 + $0x18] sm:$0xff]
  %v39 = vld [vmem:[%s1 + $0x20] sm:$0xf]
  %v40 = vld [vmem:[%s1 + $0x24] sm:$0xff]
  %v41 = vld [vmem:[%s1 + $0x2c] sm:$0xf]
  %v42 = vld [vmem:[%s1 + $0x30] sm:$0xff]
  %v43 = vld [vmem:[%s1 + $0x38] sm:$0xf]
  %v44 = vld [vmem:[%s1 + $0x3c] sm:$0xff]
  %v45 = vld [vmem:[%s1 + $0x44] sm:$0xf]
  %v46 = vld [vmem:[%s1 + $0x48] sm:$0xff]
  %v47 = vld [vmem:[%s1 + $0x50] sm:$0xf]
  %v48 = vld [vmem:[%s1 + $0x54] sm:$0xff]
  %v49 = vld [vmem:[%s1 + $0x5c] sm:$0xf]
  %v50 = vld [vmem:[%s1 + $0x60] sm:$0xff]
  %v51 = vld [vmem:[%s1 + $0x68] sm:$0xf]
  %v52 = vld [vmem:[%s1 + $0x6c] sm:$0xff]
  %v53 = vld [vmem:[%s1 + $0x74] sm:$0xf]
  %v54 = vld [vmem:[%s1 + $0x78] sm:$0xff]
  %v55 = vld [vmem:[%s1 + $0x80] sm:$0xf]
  %v56 = vld [vmem:[%s1 + $0x84] sm:$0xff]
  %v57 = vld [vmem:[%s1 + $0x8c] sm:$0xf]
  %v58 = vld [vmem:[%s1 + $0x90] sm:$0xff]
  %v59 = vld [vmem:[%s1 + $0x98] sm:$0xf]
  %v60 = vld [vmem:[%s1 + $0x9c] sm:$0xff]
  %v61 = vld [vmem:[%s1 + $0xa4] sm:$0xf]
  %v62 = vld [vmem:[%s1 + $0xa8] sm:$0xff]
  %v63 = vld [vmem:[%s1 + $0xb0] sm:$0xf]
  %v64 = vld [vmem:[%s1 + $0xb4] sm:$0xff]
  %v65 = vld [vmem:[%s1 + $0xbc] sm:$0xf]
  %v66 = vld [vmem:[%s3] sm:$0x7]
  %v68 = vlaneseq
  %v69 = vshrl.u32 %v68, 7
  %v70 = vsub.s32 0, %v69
  %v71 = vrot.slane %v66, %v70
  %v72 = vlaneseq
  %v73 = vshrl.u32 %v72, 7
  %v74 = vsub.s32 1, %v73
  %v75 = vrot.slane %v66, %v74
  %v76 = vlaneseq
  %v77 = vshrl.u32 %v76, 7
  %v78 = vsub.s32 2, %v77
  %v79 = vrot.slane %v66, %v78
  %v91 = vunpack.c.l.b16 %v26
  %v92 = vunpack.c.l.b16 %v27
  %v93 = vunpack.c.l.b16 %v28
  %v94 = vunpack.c.l.b16 %v29
  %v95 = vunpack.c.l.b16 %v30
  %v96 = vunpack.c.l.b16 %v31
  %v97 = vunpack.c.l.b16 %v32
  %v98 = vunpack.c.l.b16 %v33
  %v99 = vpack.c.b16 %v92, %v91
  %v100 = vpack.c.b16 %v94, %v93
  %v101 = vpack.c.b16 %v96, %v95
  %v102 = vpack.c.b16 %v98, %v97
  %v139 = vunpack.c.l.b16 %v34
  %v140 = vunpack.c.h.b16 %v34
  %v141 = vunpack.c.l.b16 %v35
  %v142 = vunpack.c.l.b16 %v36
  %v143 = vunpack.c.h.b16 %v36
  %v144 = vunpack.c.l.b16 %v37
  %v145 = vunpack.c.l.b16 %v38
  %v146 = vunpack.c.h.b16 %v38
  %v147 = vunpack.c.l.b16 %v39
  %v148 = vunpack.c.l.b16 %v40
  %v149 = vunpack.c.h.b16 %v40
  %v150 = vunpack.c.l.b16 %v41
  %v151 = vunpack.c.l.b16 %v42
  %v152 = vunpack.c.h.b16 %v42
  %v153 = vunpack.c.l.b16 %v43
  %v154 = vunpack.c.l.b16 %v44
  %v155 = vunpack.c.h.b16 %v44
  %v156 = vunpack.c.l.b16 %v45
  %v157 = vunpack.c.l.b16 %v46
  %v158 = vunpack.c.h.b16 %v46
  %v159 = vunpack.c.l.b16 %v47
  %v160 = vunpack.c.l.b16 %v48
  %v161 = vunpack.c.h.b16 %v48
  %v162 = vunpack.c.l.b16 %v49
  %v163 = vunpack.c.l.b16 %v50
  %v164 = vunpack.c.h.b16 %v50
  %v165 = vunpack.c.l.b16 %v51
  %v166 = vunpack.c.l.b16 %v52
  %v167 = vunpack.c.h.b16 %v52
  %v168 = vunpack.c.l.b16 %v53
  %v169 = vunpack.c.l.b16 %v54
  %v170 = vunpack.c.h.b16 %v54
  %v171 = vunpack.c.l.b16 %v55
  %v172 = vunpack.c.l.b16 %v56
  %v173 = vunpack.c.h.b16 %v56
  %v174 = vunpack.c.l.b16 %v57
  %v175 = vunpack.c.l.b16 %v58
  %v176 = vunpack.c.h.b16 %v58
  %v177 = vunpack.c.l.b16 %v59
  %v178 = vunpack.c.l.b16 %v60
  %v179 = vunpack.c.h.b16 %v60
  %v180 = vunpack.c.l.b16 %v61
  %v181 = vunpack.c.l.b16 %v62
  %v182 = vunpack.c.h.b16 %v62
  %v183 = vunpack.c.l.b16 %v63
  %v184 = vunpack.c.l.b16 %v64
  %v185 = vunpack.c.h.b16 %v64
  %v186 = vunpack.c.l.b16 %v65
  %v187 = vpack.c.b16 %v142, %v139
  %v188 = vpack.c.b16 %v143, %v140
  %v189 = vpack.c.b16 %v144, %v141
  %v190 = vpack.c.b16 %v148, %v145
  %v191 = vpack.c.b16 %v149, %v146
  %v192 = vpack.c.b16 %v150, %v147
  %v193 = vpack.c.b16 %v154, %v151
  %v194 = vpack.c.b16 %v155, %v152
  %v195 = vpack.c.b16 %v156, %v153
  %v196 = vpack.c.b16 %v160, %v157
  %v197 = vpack.c.b16 %v161, %v158
  %v198 = vpack.c.b16 %v162, %v159
  %v199 = vpack.c.b16 %v166, %v163
  %v200 = vpack.c.b16 %v167, %v164
  %v201 = vpack.c.b16 %v168, %v165
  %v202 = vpack.c.b16 %v172, %v169
  %v203 = vpack.c.b16 %v173, %v170
  %v204 = vpack.c.b16 %v174, %v171
  %v205 = vpack.c.b16 %v178, %v175
  %v206 = vpack.c.b16 %v179, %v176
  %v207 = vpack.c.b16 %v180, %v177
  %v208 = vpack.c.b16 %v184, %v181
  %v209 = vpack.c.b16 %v185, %v182
  %v210 = vpack.c.b16 %v186, %v183
  %235 = vmatprep.subr.bf16.mxu0 %v209
  %236 = vmatpush1.bf16.msra.mxu0 %v208
  %237 = vmatprep.subr.bf16.mxu0 %v206
  %238 = vmatpush1.bf16.msra.mxu0 %v205
  %239 = vmatprep.subr.bf16.mxu0 %v203
  %240 = vmatpush1.bf16.msra.mxu0 %v202
  %241 = vmatprep.subr.bf16.mxu0 %v200
  %242 = vmatpush1.bf16.msra.mxu0 %v199
  %243 = vmatprep.subr.bf16.mxu0 %v197
  %244 = vmatpush1.bf16.msra.mxu0 %v196
  %245 = vmatprep.subr.bf16.mxu0 %v194
  %246 = vmatpush1.bf16.msra.mxu0 %v193
  %247 = vmatprep.subr.bf16.mxu0 %v191
  %248 = vmatpush1.bf16.msra.mxu0 %v190
  %249 = vmatprep.subr.bf16.mxu0 %v188
  %250 = vmatpush1.bf16.msra.mxu0 %v187
  %251 = vmatprep.subr.bf16.mxu0 0
  %252 = vmatpush2.bf16.msra.mxu0 0
  %253 = vmatprep.subr.bf16.mxu0 0
  %254 = vmatpush2.bf16.msra.mxu0 0
  %255 = vmatprep.subr.bf16.mxu0 0
  %256 = vmatpush2.bf16.msra.mxu0 0
  %257 = vmatprep.subr.bf16.mxu0 0
  %258 = vmatpush2.bf16.msra.mxu0 0
  %259 = vmatprep.subr.bf16.mxu0 0
  %260 = vmatpush2.bf16.msra.mxu0 0
  %261 = vmatprep.subr.bf16.mxu0 0
  %262 = vmatpush2.bf16.msra.mxu0 0
  %263 = vmatprep.subr.bf16.mxu0 0
  %264 = vmatpush2.bf16.msra.mxu0 0
  %265 = vmatprep.subr.bf16.mxu0 0
  %266 = vmatpush2.bf16.msra.mxu0 0
  %267 = vmatprep.mubr.bf16.mxu0 0
  %268 = vmatmul.mubr.bf16.gmra.mxu0 %v99
  %v269 = vpop.f32.mrf.mxu0
  %v270 = vadd.f32 %v71, %v269
  %v271 = vpop.f32.mrf.mxu0
  %v272 = vadd.f32 %v75, %v271
  %v273 = vpop.f32.mrf.mxu0
  %v274 = vadd.f32 %v71, %v273
  %v275 = vpop.f32.mrf.mxu0
  %v276 = vadd.f32 %v75, %v275
  %277 = vmatprep.mubr.bf16.mxu0 0
  %278 = vmatmul.mubr.bf16.gmra.mxu0 %v100
  %v279 = vpop.f32.mrf.mxu0
  %v280 = vadd.f32 %v71, %v279
  %v281 = vpop.f32.mrf.mxu0
  %v282 = vadd.f32 %v75, %v281
  %v283 = vpop.f32.mrf.mxu0
  %v284 = vadd.f32 %v71, %v283
  %v285 = vpop.f32.mrf.mxu0
  %v286 = vadd.f32 %v75, %v285
  %287 = vmatprep.mubr.bf16.mxu0 0
  %288 = vmatmul.mubr.bf16.gmra.mxu0 %v101
  %v289 = vpop.f32.mrf.mxu0
  %v290 = vadd.f32 %v71, %v289
  %v291 = vpop.f32.mrf.mxu0
  %v292 = vadd.f32 %v75, %v291
  %v293 = vpop.f32.mrf.mxu0
  %v294 = vadd.f32 %v71, %v293
  %v295 = vpop.f32.mrf.mxu0
  %v296 = vadd.f32 %v75, %v295
  %297 = vmatprep.mubr.bf16.mxu0 0
  %298 = vmatmul.mubr.bf16.gmra.mxu0 %v102
  %v299 = vpop.f32.mrf.mxu0
  %v300 = vadd.f32 %v71, %v299
  %v301 = vpop.f32.mrf.mxu0
  %v302 = vadd.f32 %v75, %v301
  %v303 = vpop.f32.mrf.mxu0
  %v304 = vadd.f32 %v71, %v303
  %v305 = vpop.f32.mrf.mxu0
  %v306 = vadd.f32 %v75, %v305
  %307 = vdwg.mxu0
  %308 = vmatprep.subr.bf16.mxu0 0
  %309 = vmatpush1.bf16.msra.mxu0 %v210
  %310 = vmatprep.subr.bf16.mxu0 0
  %311 = vmatpush1.bf16.msra.mxu0 %v207
  %312 = vmatprep.subr.bf16.mxu0 0
  %313 = vmatpush1.bf16.msra.mxu0 %v204
  %314 = vmatprep.subr.bf16.mxu0 0
  %315 = vmatpush1.bf16.msra.mxu0 %v201
  %316 = vmatprep.subr.bf16.mxu0 0
  %317 = vmatpush1.bf16.msra.mxu0 %v198
  %318 = vmatprep.subr.bf16.mxu0 0
  %319 = vmatpush1.bf16.msra.mxu0 %v195
  %320 = vmatprep.subr.bf16.mxu0 0
  %321 = vmatpush1.bf16.msra.mxu0 %v192
  %322 = vmatprep.subr.bf16.mxu0 0
  %323 = vmatpush1.bf16.msra.mxu0 %v189
  %324 = vmatprep.subr.bf16.mxu0 0
  %325 = vmatpush2.bf16.msra.mxu0 0
  %326 = vmatprep.subr.bf16.mxu0 0
  %327 = vmatpush2.bf16.msra.mxu0 0
  %328 = vmatprep.subr.bf16.mxu0 0
  %329 = vmatpush2.bf16.msra.mxu0 0
  %330 = vmatprep.subr.bf16.mxu0 0
  %331 = vmatpush2.bf16.msra.mxu0 0
  %332 = vmatprep.subr.bf16.mxu0 0
  %333 = vmatpush2.bf16.msra.mxu0 0
  %334 = vmatprep.subr.bf16.mxu0 0
  %335 = vmatpush2.bf16.msra.mxu0 0
  %336 = vmatprep.subr.bf16.mxu0 0
  %337 = vmatpush2.bf16.msra.mxu0 0
  %338 = vmatprep.subr.bf16.mxu0 0
  %339 = vmatpush2.bf16.msra.mxu0 0
  %340 = vmatprep.mubr.bf16.mxu0 0
  %341 = vmatmul.mubr.bf16.gmra.mxu0 %v99
  %v342 = vpop.f32.mrf.mxu0
  %v343 = vadd.f32 %v79, %v342
  %v344 = vpop.f32.mrf.mxu0
  %v345 = vpop.f32.mrf.mxu0
  %v346 = vadd.f32 %v79, %v345
  %v347 = vpop.f32.mrf.mxu0
  %348 = vmatprep.mubr.bf16.mxu0 0
  %349 = vmatmul.mubr.bf16.gmra.mxu0 %v100
  %v350 = vpop.f32.mrf.mxu0
  %v351 = vadd.f32 %v79, %v350
  %v352 = vpop.f32.mrf.mxu0
  %v353 = vpop.f32.mrf.mxu0
  %v354 = vadd.f32 %v79, %v353
  %v355 = vpop.f32.mrf.mxu0
  %356 = vmatprep.mubr.bf16.mxu0 0
  %357 = vmatmul.mubr.bf16.gmra.mxu0 %v101
  %v358 = vpop.f32.mrf.mxu0
  %v359 = vadd.f32 %v79, %v358
  %v360 = vpop.f32.mrf.mxu0
  %v361 = vpop.f32.mrf.mxu0
  %v362 = vadd.f32 %v79, %v361
  %v363 = vpop.f32.mrf.mxu0
  %364 = vmatprep.mubr.bf16.mxu0 0
  %365 = vmatmul.mubr.bf16.gmra.mxu0 %v102
  %v366 = vpop.f32.mrf.mxu0
  %v367 = vadd.f32 %v79, %v366
  %v368 = vpop.f32.mrf.mxu0
  %v369 = vpop.f32.mrf.mxu0
  %v370 = vadd.f32 %v79, %v369
  %v371 = vpop.f32.mrf.mxu0
  %372 = vdwg.mxu0
  %373 = vst [vmem:[#allocation2] sm:$0xff] %v270
  %374 = vst [vmem:[#allocation2 + $0x8] sm:$0xff] %v272
  %375 = vst [vmem:[#allocation2 + $0x10] sm:$0xff] %v343
  %376 = vst [vmem:[#allocation2 + $0x18] sm:$0xff] %v274
  %377 = vst [vmem:[#allocation2 + $0x20] sm:$0xff] %v276
  %378 = vst [vmem:[#allocation2 + $0x28] sm:$0xff] %v346
  %379 = vst [vmem:[#allocation2 + $0x30] sm:$0xff] %v280
  %380 = vst [vmem:[#allocation2 + $0x38] sm:$0xff] %v282
  %381 = vst [vmem:[#allocation2 + $0x40] sm:$0xff] %v351
  %382 = vst [vmem:[#allocation2 + $0x48] sm:$0xff] %v284
  %383 = vst [vmem:[#allocation2 + $0x50] sm:$0xff] %v286
  %384 = vst [vmem:[#allocation2 + $0x58] sm:$0xff] %v354
  %385 = vst [vmem:[#allocation2 + $0x60] sm:$0xff] %v290
  %386 = vst [vmem:[#allocation2 + $0x68] sm:$0xff] %v292
  %387 = vst [vmem:[#allocation2 + $0x70] sm:$0xff] %v359
  %388 = vst [vmem:[#allocation2 + $0x78] sm:$0xff] %v294
  %389 = vst [vmem:[#allocation2 + $0x80] sm:$0xff] %v296
  %390 = vst [vmem:[#allocation2 + $0x88] sm:$0xff] %v362
  %391 = vst [vmem:[#allocation2 + $0x90] sm:$0xff] %v300
  %392 = vst [vmem:[#allocation2 + $0x98] sm:$0xff] %v302
  %393 = vst [vmem:[#allocation2 + $0xa0] sm:$0xff] %v367
  %394 = vst [vmem:[#allocation2 + $0xa8] sm:$0xff] %v304
  %395 = vst [vmem:[#allocation2 + $0xb0] sm:$0xff] %v306
  %396 = vst [vmem:[#allocation2 + $0xb8] sm:$0xff] %v370
  %v397 = vld [vmem:[%s2] sm:$0xff]
  %v398 = vld [vmem:[%s2 + $0x8] sm:$0xf]
  %v399 = vld [vmem:[%s2 + $0xc] sm:$0xff]
  %v400 = vld [vmem:[%s2 + $0x14] sm:$0xf]
  %v401 = vld [vmem:[%s2 + $0x18] sm:$0xff]
  %v402 = vld [vmem:[%s2 + $0x20] sm:$0xf]
  %v403 = vld [vmem:[%s2 + $0x24] sm:$0xff]
  %v404 = vld [vmem:[%s2 + $0x2c] sm:$0xf]
  %v405 = vld [vmem:[%s2 + $0x30] sm:$0xff]
  %v406 = vld [vmem:[%s2 + $0x38] sm:$0xf]
  %v407 = vld [vmem:[%s2 + $0x3c] sm:$0xff]
  %v408 = vld [vmem:[%s2 + $0x44] sm:$0xf]
  %v409 = vld [vmem:[%s2 + $0x48] sm:$0xff]
  %v410 = vld [vmem:[%s2 + $0x50] sm:$0xf]
  %v411 = vld [vmem:[%s2 + $0x54] sm:$0xff]
  %v412 = vld [vmem:[%s2 + $0x5c] sm:$0xf]
  %v413 = vld [vmem:[%s2 + $0x60] sm:$0xff]
  %v414 = vld [vmem:[%s2 + $0x68] sm:$0xf]
  %v415 = vld [vmem:[%s2 + $0x6c] sm:$0xff]
  %v416 = vld [vmem:[%s2 + $0x74] sm:$0xf]
  %v417 = vld [vmem:[%s2 + $0x78] sm:$0xff]
  %v418 = vld [vmem:[%s2 + $0x80] sm:$0xf]
  %v419 = vld [vmem:[%s2 + $0x84] sm:$0xff]
  %v420 = vld [vmem:[%s2 + $0x8c] sm:$0xf]
  %v421 = vld [vmem:[%s2 + $0x90] sm:$0xff]
  %v422 = vld [vmem:[%s2 + $0x98] sm:$0xf]
  %v423 = vld [vmem:[%s2 + $0x9c] sm:$0xff]
  %v424 = vld [vmem:[%s2 + $0xa4] sm:$0xf]
  %v425 = vld [vmem:[%s2 + $0xa8] sm:$0xff]
  %v426 = vld [vmem:[%s2 + $0xb0] sm:$0xf]
  %v427 = vld [vmem:[%s2 + $0xb4] sm:$0xff]
  %v428 = vld [vmem:[%s2 + $0xbc] sm:$0xf]
  %v429 = vld [vmem:[%s4] sm:$0x1]
  %v430 = vld [vmem:[#allocation3] sm:$0xff]
  %v431 = vld [vmem:[#allocation2] sm:$0xff]
  %v432 = vld [vmem:[#allocation2 + $0x8] sm:$0xff]
  %v433 = vld [vmem:[#allocation2 + $0x10] sm:$0xff]
  %v434 = vpack.c.bf16 %v430, %v430
  %v467 = vunpack.c.l.b16 %v397
  %v468 = vunpack.c.h.b16 %v397
  %v469 = vunpack.c.l.b16 %v398
  %v470 = vunpack.c.l.b16 %v399
  %v471 = vunpack.c.h.b16 %v399
  %v472 = vunpack.c.l.b16 %v400
  %v473 = vunpack.c.l.b16 %v401
  %v474 = vunpack.c.h.b16 %v401
  %v475 = vunpack.c.l.b16 %v402
  %v476 = vunpack.c.l.b16 %v403
  %v477 = vunpack.c.h.b16 %v403
  %v478 = vunpack.c.l.b16 %v404
  %v479 = vunpack.c.l.b16 %v405
  %v480 = vunpack.c.h.b16 %v405
  %v481 = vunpack.c.l.b16 %v406
  %v482 = vunpack.c.l.b16 %v407
  %v483 = vunpack.c.h.b16 %v407
  %v484 = vunpack.c.l.b16 %v408
  %v485 = vunpack.c.l.b16 %v409
  %v486 = vunpack.c.h.b16 %v409
  %v487 = vunpack.c.l.b16 %v410
  %v488 = vunpack.c.l.b16 %v411
  %v489 = vunpack.c.h.b16 %v411
  %v490 = vunpack.c.l.b16 %v412
  %v491 = vunpack.c.l.b16 %v413
  %v492 = vunpack.c.h.b16 %v413
  %v493 = vunpack.c.l.b16 %v414
  %v494 = vunpack.c.l.b16 %v415
  %v495 = vunpack.c.h.b16 %v415
  %v496 = vunpack.c.l.b16 %v416
  %v497 = vunpack.c.l.b16 %v417
  %v498 = vunpack.c.h.b16 %v417
  %v499 = vunpack.c.l.b16 %v418
  %v500 = vunpack.c.l.b16 %v419
  %v501 = vunpack.c.h.b16 %v419
  %v502 = vunpack.c.l.b16 %v420
  %v503 = vunpack.c.l.b16 %v421
  %v504 = vunpack.c.h.b16 %v421
  %v505 = vunpack.c.l.b16 %v422
  %v506 = vunpack.c.l.b16 %v423
  %v507 = vunpack.c.h.b16 %v423
  %v508 = vunpack.c.l.b16 %v424
  %v509 = vunpack.c.l.b16 %v425
  %v510 = vunpack.c.h.b16 %v425
  %v511 = vunpack.c.l.b16 %v426
  %v512 = vunpack.c.l.b16 %v427
  %v513 = vunpack.c.h.b16 %v427
  %v514 = vunpack.c.l.b16 %v428
  %v515 = vpack.c.b16 %v470, %v467
  %v516 = vpack.c.b16 %v471, %v468
  %v517 = vpack.c.b16 %v472, %v469
  %v518 = vpack.c.b16 %v476, %v473
  %v519 = vpack.c.b16 %v477, %v474
  %v520 = vpack.c.b16 %v478, %v475
  %v521 = vpack.c.b16 %v482, %v479
  %v522 = vpack.c.b16 %v483, %v480
  %v523 = vpack.c.b16 %v484, %v481
  %v524 = vpack.c.b16 %v488, %v485
  %v525 = vpack.c.b16 %v489, %v486
  %v526 = vpack.c.b16 %v490, %v487
  %v527 = vpack.c.b16 %v494, %v491
  %v528 = vpack.c.b16 %v495, %v492
  %v529 = vpack.c.b16 %v496, %v493
  %v530 = vpack.c.b16 %v500, %v497
  %v531 = vpack.c.b16 %v501, %v498
  %v532 = vpack.c.b16 %v502, %v499
  %v533 = vpack.c.b16 %v506, %v503
  %v534 = vpack.c.b16 %v507, %v504
  %v535 = vpack.c.b16 %v508, %v505
  %v536 = vpack.c.b16 %v512, %v509
  %v537 = vpack.c.b16 %v513, %v510
  %v538 = vpack.c.b16 %v514, %v511
  %563 = vmatprep.subr.bf16.mxu0 %v537
  %564 = vmatpush1.bf16.msra.mxu0 %v536
  %565 = vmatprep.subr.bf16.mxu0 %v534
  %566 = vmatpush1.bf16.msra.mxu0 %v533
  %567 = vmatprep.subr.bf16.mxu0 %v531
  %568 = vmatpush1.bf16.msra.mxu0 %v530
  %569 = vmatprep.subr.bf16.mxu0 %v528
  %570 = vmatpush1.bf16.msra.mxu0 %v527
  %571 = vmatprep.subr.bf16.mxu0 %v525
  %572 = vmatpush1.bf16.msra.mxu0 %v524
  %573 = vmatprep.subr.bf16.mxu0 %v522
  %574 = vmatpush1.bf16.msra.mxu0 %v521
  %575 = vmatprep.subr.bf16.mxu0 %v519
  %576 = vmatpush1.bf16.msra.mxu0 %v518
  %577 = vmatprep.subr.bf16.mxu0 %v516
  %578 = vmatpush1.bf16.msra.mxu0 %v515
  %579 = vmatprep.subr.bf16.mxu0 0
  %580 = vmatpush2.bf16.msra.mxu0 0
  %581 = vmatprep.subr.bf16.mxu0 0
  %582 = vmatpush2.bf16.msra.mxu0 0
  %583 = vmatprep.subr.bf16.mxu0 0
  %584 = vmatpush2.bf16.msra.mxu0 0
  %585 = vmatprep.subr.bf16.mxu0 0
  %586 = vmatpush2.bf16.msra.mxu0 0
  %587 = vmatprep.subr.bf16.mxu0 0
  %588 = vmatpush2.bf16.msra.mxu0 0
  %589 = vmatprep.subr.bf16.mxu0 0
  %590 = vmatpush2.bf16.msra.mxu0 0
  %591 = vmatprep.subr.bf16.mxu0 0
  %592 = vmatpush2.bf16.msra.mxu0 0
  %593 = vmatprep.subr.bf16.mxu0 0
  %594 = vmatpush2.bf16.msra.mxu0 0
  %595 = vmatprep.mubr.bf16.mxu0 0
  %596 = vmatmul.mubr.bf16.gmra.mxu0 %v434
  %v597 = vpop.f32.mrf.mxu0
  %v598 = vadd.f32 0.0, %v597
  %v599 = vpop.f32.mrf.mxu0
  %v600 = vadd.f32 0.0, %v599
  %v601 = vpop.f32.mrf.mxu0
  %v602 = vpop.f32.mrf.mxu0
  %603 = vdwg.mxu0
  %604 = vmatprep.subr.bf16.mxu0 0
  %605 = vmatpush1.bf16.msra.mxu0 %v538
  %606 = vmatprep.subr.bf16.mxu0 0
  %607 = vmatpush1.bf16.msra.mxu0 %v535
  %608 = vmatprep.subr.bf16.mxu0 0
  %609 = vmatpush1.bf16.msra.mxu0 %v532
  %610 = vmatprep.subr.bf16.mxu0 0
  %611 = vmatpush1.bf16.msra.mxu0 %v529
  %612 = vmatprep.subr.bf16.mxu0 0
  %613 = vmatpush1.bf16.msra.mxu0 %v526
  %614 = vmatprep.subr.bf16.mxu0 0
  %615 = vmatpush1.bf16.msra.mxu0 %v523
  %616 = vmatprep.subr.bf16.mxu0 0
  %617 = vmatpush1.bf16.msra.mxu0 %v520
  %618 = vmatprep.subr.bf16.mxu0 0
  %619 = vmatpush1.bf16.msra.mxu0 %v517
  %620 = vmatprep.subr.bf16.mxu0 0
  %621 = vmatpush2.bf16.msra.mxu0 0
  %622 = vmatprep.subr.bf16.mxu0 0
  %623 = vmatpush2.bf16.msra.mxu0 0
  %624 = vmatprep.subr.bf16.mxu0 0
  %625 = vmatpush2.bf16.msra.mxu0 0
  %626 = vmatprep.subr.bf16.mxu0 0
  %627 = vmatpush2.bf16.msra.mxu0 0
  %628 = vmatprep.subr.bf16.mxu0 0
  %629 = vmatpush2.bf16.msra.mxu0 0
  %630 = vmatprep.subr.bf16.mxu0 0
  %631 = vmatpush2.bf16.msra.mxu0 0
  %632 = vmatprep.subr.bf16.mxu0 0
  %633 = vmatpush2.bf16.msra.mxu0 0
  %634 = vmatprep.subr.bf16.mxu0 0
  %635 = vmatpush2.bf16.msra.mxu0 0
  %636 = vmatprep.mubr.bf16.mxu0 0
  %637 = vmatmul.mubr.bf16.gmra.mxu0 %v434
  %v638 = vpop.f32.mrf.mxu0
  %v639 = vadd.f32 0.0, %v638
  %v640 = vpop.f32.mrf.mxu0
  %v641 = vpop.f32.mrf.mxu0
  %v642 = vpop.f32.mrf.mxu0
  %643 = vdwg.mxu0
  %v644 = vadd.f32 %v431, %v598
  %v645 = vadd.f32 %v432, %v600
  %v646 = vxor.u32 %v644, 2147483648
  %v647 = vxor.u32 %v645, 2147483648
  %v648 = vmul.f32 %v646, 1.442695
  %v649 = vpow.pop %v648
  %v650 = vmul.f32 %v647, 1.442695
  %v651 = vpow.pop %v650
  %v652 = vadd.f32 %v649, 1.0
  %v653 = vadd.f32 %v651, 1.0
  %v654 = vrcp.pop %v652
  %v655 = vmul.f32 1.0, %v654
  %v656 = vrcp.pop %v653
  %v657 = vmul.f32 1.0, %v656
  %v659 = vlaneseq
  %v660 = vshrl.u32 %v659, 7
  %v661 = vsub.s32 0, %v660
  %v662 = vrot.slane %v429, %v661
  %v664 = vadd.f32 %v639, %v662
  %v665 = vmul.f32 %v655, %v664
  %v666 = vadd.f32 %v433, %v665
  %v667 = vtanh.pop %v666
  %v668 = vsub.f32 1.0, %v657
  %v669 = vmul.f32 %v668, %v667
  %v670 = vmul.f32 %v657, %v430
  %v671 = vadd.f32 %v669, %v670
  %672 = vst [vmem:[%s5] sm:$0xff] %v671
  %v673 = vld [vmem:[#allocation2 + $0x18] sm:$0xff]
  %v674 = vld [vmem:[#allocation2 + $0x20] sm:$0xff]
  %v675 = vld [vmem:[#allocation2 + $0x28] sm:$0xff]
  %v676 = vpack.c.bf16 %v671, %v671
  %677 = vmatprep.subr.bf16.mxu0 %v537
  %678 = vmatpush1.bf16.msra.mxu0 %v536
  %679 = vmatprep.subr.bf16.mxu0 %v534
  %680 = vmatpush1.bf16.msra.mxu0 %v533
  %681 = vmatprep.subr.bf16.mxu0 %v531
  %682 = vmatpush1.bf16.msra.mxu0 %v530
  %683 = vmatprep.subr.bf16.mxu0 %v528
  %684 = vmatpush1.bf16.msra.mxu0 %v527
  %685 = vmatprep.subr.bf16.mxu0 %v525
  %686 = vmatpush1.bf16.msra.mxu0 %v524
  %687 = vmatprep.subr.bf16.mxu0 %v522
  %688 = vmatpush1.bf16.msra.mxu0 %v521
  %689 = vmatprep.subr.bf16.mxu0 %v519
  %690 = vmatpush1.bf16.msra.mxu0 %v518
  %691 = vmatprep.subr.bf16.mxu0 %v516
  %692 = vmatpush1.bf16.msra.mxu0 %v515
  %693 = vmatprep.subr.bf16.mxu0 0
  %694 = vmatpush2.bf16.msra.mxu0 0
  %695 = vmatprep.subr.bf16.mxu0 0
  %696 = vmatpush2.bf16.msra.mxu0 0
  %697 = vmatprep.subr.bf16.mxu0 0
  %698 = vmatpush2.bf16.msra.mxu0 0
  %699 = vmatprep.subr.bf16.mxu0 0
  %700 = vmatpush2.bf16.msra.mxu0 0
  %701 = vmatprep.subr.bf16.mxu0 0
  %702 = vmatpush2.bf16.msra.mxu0 0
  %703 = vmatprep.subr.bf16.mxu0 0
  %704 = vmatpush2.bf16.msra.mxu0 0
  %705 = vmatprep.subr.bf16.mxu0 0
  %706 = vmatpush2.bf16.msra.mxu0 0
  %707 = vmatprep.subr.bf16.mxu0 0
  %708 = vmatpush2.bf16.msra.mxu0 0
  %709 = vmatprep.mubr.bf16.mxu0 0
  %710 = vmatmul.mubr.bf16.gmra.mxu0 %v676
  %v711 = vpop.f32.mrf.mxu0
  %v712 = vadd.f32 0.0, %v711
  %v713 = vpop.f32.mrf.mxu0
  %v714 = vadd.f32 0.0, %v713
  %v715 = vpop.f32.mrf.mxu0
  %v716 = vpop.f32.mrf.mxu0
  %717 = vdwg.mxu0
  %718 = vmatprep.subr.bf16.mxu0 0
  %719 = vmatpush1.bf16.msra.mxu0 %v538
  %720 = vmatprep.subr.bf16.mxu0 0
  %721 = vmatpush1.bf16.msra.mxu0 %v535
  %722 = vmatprep.subr.bf16.mxu0 0
  %723 = vmatpush1.bf16.msra.mxu0 %v532
  %724 = vmatprep.subr.bf16.mxu0 0
  %725 = vmatpush1.bf16.msra.mxu0 %v529
  %726 = vmatprep.subr.bf16.mxu0 0
  %727 = vmatpush1.bf16.msra.mxu0 %v526
  %728 = vmatprep.subr.bf16.mxu0 0
  %729 = vmatpush1.bf16.msra.mxu0 %v523
  %730 = vmatprep.subr.bf16.mxu0 0
  %731 = vmatpush1.bf16.msra.mxu0 %v520
  %732 = vmatprep.subr.bf16.mxu0 0
  %733 = vmatpush1.bf16.msra.mxu0 %v517
  %734 = vmatprep.subr.bf16.mxu0 0
  %735 = vmatpush2.bf16.msra.mxu0 0
  %736 = vmatprep.subr.bf16.mxu0 0
  %737 = vmatpush2.bf16.msra.mxu0 0
  %738 = vmatprep.subr.bf16.mxu0 0
  %739 = vmatpush2.bf16.msra.mxu0 0
  %740 = vmatprep.subr.bf16.mxu0 0
  %741 = vmatpush2.bf16.msra.mxu0 0
  %742 = vmatprep.subr.bf16.mxu0 0
  %743 = vmatpush2.bf16.msra.mxu0 0
  %744 = vmatprep.subr.bf16.mxu0 0
  %745 = vmatpush2.bf16.msra.mxu0 0
  %746 = vmatprep.subr.bf16.mxu0 0
  %747 = vmatpush2.bf16.msra.mxu0 0
  %748 = vmatprep.subr.bf16.mxu0 0
  %749 = vmatpush2.bf16.msra.mxu0 0
  %750 = vmatprep.mubr.bf16.mxu0 0
  %751 = vmatmul.mubr.bf16.gmra.mxu0 %v676
  %v752 = vpop.f32.mrf.mxu0
  %v753 = vadd.f32 0.0, %v752
  %v754 = vpop.f32.mrf.mxu0
  %v755 = vpop.f32.mrf.mxu0
  %v756 = vpop.f32.mrf.mxu0
  %757 = vdwg.mxu0
  %v758 = vadd.f32 %v673, %v712
  %v759 = vadd.f32 %v674, %v714
  %v760 = vxor.u32 %v758, 2147483648
  %v761 = vxor.u32 %v759, 2147483648
  %v762 = vmul.f32 %v760, 1.442695
  %v763 = vpow.pop %v762
  %v764 = vmul.f32 %v761, 1.442695
  %v765 = vpow.pop %v764
  %v766 = vadd.f32 %v763, 1.0
  %v767 = vadd.f32 %v765, 1.0
  %v768 = vrcp.pop %v766
  %v769 = vmul.f32 1.0, %v768
  %v770 = vrcp.pop %v767
  %v771 = vmul.f32 1.0, %v770
  %v772 = vadd.f32 %v753, %v662
  %v773 = vmul.f32 %v769, %v772
  %v774 = vadd.f32 %v675, %v773
  %v775 = vtanh.pop %v774
  %v776 = vsub.f32 1.0, %v771
  %v777 = vmul.f32 %v776, %v775
  %v778 = vmul.f32 %v771, %v671
  %v779 = vadd.f32 %v777, %v778
  %s780 = scalar_lea.vmem %s5, 8
  %781 = vst [vmem:[%s780] sm:$0xff] %v779
  %v782 = vld [vmem:[#allocation2 + $0x30] sm:$0xff]
  %v783 = vld [vmem:[#allocation2 + $0x38] sm:$0xff]
  %v784 = vld [vmem:[#allocation2 + $0x40] sm:$0xff]
  %v785 = vpack.c.bf16 %v779, %v779
  %786 = vmatprep.subr.bf16.mxu0 %v537
  %787 = vmatpush1.bf16.msra.mxu0 %v536
  %788 = vmatprep.subr.bf16.mxu0 %v534
  %789 = vmatpush1.bf16.msra.mxu0 %v533
  %790 = vmatprep.subr.bf16.mxu0 %v531
  %791 = vmatpush1.bf16.msra.mxu0 %v530
  %792 = vmatprep.subr.bf16.mxu0 %v528
  %793 = vmatpush1.bf16.msra.mxu0 %v527
  %794 = vmatprep.subr.bf16.mxu0 %v525
  %795 = vmatpush1.bf16.msra.mxu0 %v524
  %796 = vmatprep.subr.bf16.mxu0 %v522
  %797 = vmatpush1.bf16.msra.mxu0 %v521
  %798 = vmatprep.subr.bf16.mxu0 %v519
  %799 = vmatpush1.bf16.msra.mxu0 %v518
  %800 = vmatprep.subr.bf16.mxu0 %v516
  %801 = vmatpush1.bf16.msra.mxu0 %v515
  %802 = vmatprep.subr.bf16.mxu0 0
  %803 = vmatpush2.bf16.msra.mxu0 0
  %804 = vmatprep.subr.bf16.mxu0 0
  %805 = vmatpush2.bf16.msra.mxu0 0
  %806 = vmatprep.subr.bf16.mxu0 0
  %807 = vmatpush2.bf16.msra.mxu0 0
  %808 = vmatprep.subr.bf16.mxu0 0
  %809 = vmatpush2.bf16.msra.mxu0 0
  %810 = vmatprep.subr.bf16.mxu0 0
  %811 = vmatpush2.bf16.msra.mxu0 0
  %812 = vmatprep.subr.bf16.mxu0 0
  %813 = vmatpush2.bf16.msra.mxu0 0
  %814 = vmatprep.subr.bf16.mxu0 0
  %815 = vmatpush2.bf16.msra.mxu0 0
  %816 = vmatprep.subr.bf16.mxu0 0
  %817 = vmatpush2.bf16.msra.mxu0 0
  %818 = vmatprep.mubr.bf16.mxu0 0
  %819 = vmatmul.mubr.bf16.gmra.mxu0 %v785
  %v820 = vpop.f32.mrf.mxu0
  %v821 = vadd.f32 0.0, %v820
  %v822 = vpop.f32.mrf.mxu0
  %v823 = vadd.f32 0.0, %v822
  %v824 = vpop.f32.mrf.mxu0
  %v825 = vpop.f32.mrf.mxu0
  %826 = vdwg.mxu0
  %827 = vmatprep.subr.bf16.mxu0 0
  %828 = vmatpush1.bf16.msra.mxu0 %v538
  %829 = vmatprep.subr.bf16.mxu0 0
  %830 = vmatpush1.bf16.msra.mxu0 %v535
  %831 = vmatprep.subr.bf16.mxu0 0
  %832 = vmatpush1.bf16.msra.mxu0 %v532
  %833 = vmatprep.subr.bf16.mxu0 0
  %834 = vmatpush1.bf16.msra.mxu0 %v529
  %835 = vmatprep.subr.bf16.mxu0 0
  %836 = vmatpush1.bf16.msra.mxu0 %v526
  %837 = vmatprep.subr.bf16.mxu0 0
  %838 = vmatpush1.bf16.msra.mxu0 %v523
  %839 = vmatprep.subr.bf16.mxu0 0
  %840 = vmatpush1.bf16.msra.mxu0 %v520
  %841 = vmatprep.subr.bf16.mxu0 0
  %842 = vmatpush1.bf16.msra.mxu0 %v517
  %843 = vmatprep.subr.bf16.mxu0 0
  %844 = vmatpush2.bf16.msra.mxu0 0
  %845 = vmatprep.subr.bf16.mxu0 0
  %846 = vmatpush2.bf16.msra.mxu0 0
  %847 = vmatprep.subr.bf16.mxu0 0
  %848 = vmatpush2.bf16.msra.mxu0 0
  %849 = vmatprep.subr.bf16.mxu0 0
  %850 = vmatpush2.bf16.msra.mxu0 0
  %851 = vmatprep.subr.bf16.mxu0 0
  %852 = vmatpush2.bf16.msra.mxu0 0
  %853 = vmatprep.subr.bf16.mxu0 0
  %854 = vmatpush2.bf16.msra.mxu0 0
  %855 = vmatprep.subr.bf16.mxu0 0
  %856 = vmatpush2.bf16.msra.mxu0 0
  %857 = vmatprep.subr.bf16.mxu0 0
  %858 = vmatpush2.bf16.msra.mxu0 0
  %859 = vmatprep.mubr.bf16.mxu0 0
  %860 = vmatmul.mubr.bf16.gmra.mxu0 %v785
  %v861 = vpop.f32.mrf.mxu0
  %v862 = vadd.f32 0.0, %v861
  %v863 = vpop.f32.mrf.mxu0
  %v864 = vpop.f32.mrf.mxu0
  %v865 = vpop.f32.mrf.mxu0
  %866 = vdwg.mxu0
  %v867 = vadd.f32 %v782, %v821
  %v868 = vadd.f32 %v783, %v823
  %v869 = vxor.u32 %v867, 2147483648
  %v870 = vxor.u32 %v868, 2147483648
  %v871 = vmul.f32 %v869, 1.442695
  %v872 = vpow.pop %v871
  %v873 = vmul.f32 %v870, 1.442695
  %v874 = vpow.pop %v873
  %v875 = vadd.f32 %v872, 1.0
  %v876 = vadd.f32 %v874, 1.0
  %v877 = vrcp.pop %v875
  %v878 = vmul.f32 1.0, %v877
  %v879 = vrcp.pop %v876
  %v880 = vmul.f32 1.0, %v879
  %v881 = vadd.f32 %v862, %v662
  %v882 = vmul.f32 %v878, %v881
  %v883 = vadd.f32 %v784, %v882
  %v884 = vtanh.pop %v883
  %v885 = vsub.f32 1.0, %v880
  %v886 = vmul.f32 %v885, %v884
  %v887 = vmul.f32 %v880, %v779
  %v888 = vadd.f32 %v886, %v887
  %s889 = scalar_lea.vmem %s5, 16
  %890 = vst [vmem:[%s889] sm:$0xff] %v888
  %v891 = vld [vmem:[#allocation2 + $0x48] sm:$0xff]
  %v892 = vld [vmem:[#allocation2 + $0x50] sm:$0xff]
  %v893 = vld [vmem:[#allocation2 + $0x58] sm:$0xff]
  %v894 = vpack.c.bf16 %v888, %v888
  %895 = vmatprep.subr.bf16.mxu0 %v537
  %896 = vmatpush1.bf16.msra.mxu0 %v536
  %897 = vmatprep.subr.bf16.mxu0 %v534
  %898 = vmatpush1.bf16.msra.mxu0 %v533
  %899 = vmatprep.subr.bf16.mxu0 %v531
  %900 = vmatpush1.bf16.msra.mxu0 %v530
  %901 = vmatprep.subr.bf16.mxu0 %v528
  %902 = vmatpush1.bf16.msra.mxu0 %v527
  %903 = vmatprep.subr.bf16.mxu0 %v525
  %904 = vmatpush1.bf16.msra.mxu0 %v524
  %905 = vmatprep.subr.bf16.mxu0 %v522
  %906 = vmatpush1.bf16.msra.mxu0 %v521
  %907 = vmatprep.subr.bf16.mxu0 %v519
  %908 = vmatpush1.bf16.msra.mxu0 %v518
  %909 = vmatprep.subr.bf16.mxu0 %v516
  %910 = vmatpush1.bf16.msra.mxu0 %v515
  %911 = vmatprep.subr.bf16.mxu0 0
  %912 = vmatpush2.bf16.msra.mxu0 0
  %913 = vmatprep.subr.bf16.mxu0 0
  %914 = vmatpush2.bf16.msra.mxu0 0
  %915 = vmatprep.subr.bf16.mxu0 0
  %916 = vmatpush2.bf16.msra.mxu0 0
  %917 = vmatprep.subr.bf16.mxu0 0
  %918 = vmatpush2.bf16.msra.mxu0 0
  %919 = vmatprep.subr.bf16.mxu0 0
  %920 = vmatpush2.bf16.msra.mxu0 0
  %921 = vmatprep.subr.bf16.mxu0 0
  %922 = vmatpush2.bf16.msra.mxu0 0
  %923 = vmatprep.subr.bf16.mxu0 0
  %924 = vmatpush2.bf16.msra.mxu0 0
  %925 = vmatprep.subr.bf16.mxu0 0
  %926 = vmatpush2.bf16.msra.mxu0 0
  %927 = vmatprep.mubr.bf16.mxu0 0
  %928 = vmatmul.mubr.bf16.gmra.mxu0 %v894
  %v929 = vpop.f32.mrf.mxu0
  %v930 = vadd.f32 0.0, %v929
  %v931 = vpop.f32.mrf.mxu0
  %v932 = vadd.f32 0.0, %v931
  %v933 = vpop.f32.mrf.mxu0
  %v934 = vpop.f32.mrf.mxu0
  %935 = vdwg.mxu0
  %936 = vmatprep.subr.bf16.mxu0 0
  %937 = vmatpush1.bf16.msra.mxu0 %v538
  %938 = vmatprep.subr.bf16.mxu0 0
  %939 = vmatpush1.bf16.msra.mxu0 %v535
  %940 = vmatprep.subr.bf16.mxu0 0
  %941 = vmatpush1.bf16.msra.mxu0 %v532
  %942 = vmatprep.subr.bf16.mxu0 0
  %943 = vmatpush1.bf16.msra.mxu0 %v529
  %944 = vmatprep.subr.bf16.mxu0 0
  %945 = vmatpush1.bf16.msra.mxu0 %v526
  %946 = vmatprep.subr.bf16.mxu0 0
  %947 = vmatpush1.bf16.msra.mxu0 %v523
  %948 = vmatprep.subr.bf16.mxu0 0
  %949 = vmatpush1.bf16.msra.mxu0 %v520
  %950 = vmatprep.subr.bf16.mxu0 0
  %951 = vmatpush1.bf16.msra.mxu0 %v517
  %952 = vmatprep.subr.bf16.mxu0 0
  %953 = vmatpush2.bf16.msra.mxu0 0
  %954 = vmatprep.subr.bf16.mxu0 0
  %955 = vmatpush2.bf16.msra.mxu0 0
  %956 = vmatprep.subr.bf16.mxu0 0
  %957 = vmatpush2.bf16.msra.mxu0 0
  %958 = vmatprep.subr.bf16.mxu0 0
  %959 = vmatpush2.bf16.msra.mxu0 0
  %960 = vmatprep.subr.bf16.mxu0 0
  %961 = vmatpush2.bf16.msra.mxu0 0
  %962 = vmatprep.subr.bf16.mxu0 0
  %963 = vmatpush2.bf16.msra.mxu0 0
  %964 = vmatprep.subr.bf16.mxu0 0
  %965 = vmatpush2.bf16.msra.mxu0 0
  %966 = vmatprep.subr.bf16.mxu0 0
  %967 = vmatpush2.bf16.msra.mxu0 0
  %968 = vmatprep.mubr.bf16.mxu0 0
  %969 = vmatmul.mubr.bf16.gmra.mxu0 %v894
  %v970 = vpop.f32.mrf.mxu0
  %v971 = vadd.f32 0.0, %v970
  %v972 = vpop.f32.mrf.mxu0
  %v973 = vpop.f32.mrf.mxu0
  %v974 = vpop.f32.mrf.mxu0
  %975 = vdwg.mxu0
  %v976 = vadd.f32 %v891, %v930
  %v977 = vadd.f32 %v892, %v932
  %v978 = vxor.u32 %v976, 2147483648
  %v979 = vxor.u32 %v977, 2147483648
  %v980 = vmul.f32 %v978, 1.442695
  %v981 = vpow.pop %v980
  %v982 = vmul.f32 %v979, 1.442695
  %v983 = vpow.pop %v982
  %v984 = vadd.f32 %v981, 1.0
  %v985 = vadd.f32 %v983, 1.0
  %v986 = vrcp.pop %v984
  %v987 = vmul.f32 1.0, %v986
  %v988 = vrcp.pop %v985
  %v989 = vmul.f32 1.0, %v988
  %v990 = vadd.f32 %v971, %v662
  %v991 = vmul.f32 %v987, %v990
  %v992 = vadd.f32 %v893, %v991
  %v993 = vtanh.pop %v992
  %v994 = vsub.f32 1.0, %v989
  %v995 = vmul.f32 %v994, %v993
  %v996 = vmul.f32 %v989, %v888
  %v997 = vadd.f32 %v995, %v996
  %s998 = scalar_lea.vmem %s5, 24
  %999 = vst [vmem:[%s998] sm:$0xff] %v997
  %v1000 = vld [vmem:[#allocation2 + $0x60] sm:$0xff]
  %v1001 = vld [vmem:[#allocation2 + $0x68] sm:$0xff]
  %v1002 = vld [vmem:[#allocation2 + $0x70] sm:$0xff]
  %v1003 = vpack.c.bf16 %v997, %v997
  %1004 = vmatprep.subr.bf16.mxu0 %v537
  %1005 = vmatpush1.bf16.msra.mxu0 %v536
  %1006 = vmatprep.subr.bf16.mxu0 %v534
  %1007 = vmatpush1.bf16.msra.mxu0 %v533
  %1008 = vmatprep.subr.bf16.mxu0 %v531
  %1009 = vmatpush1.bf16.msra.mxu0 %v530
  %1010 = vmatprep.subr.bf16.mxu0 %v528
  %1011 = vmatpush1.bf16.msra.mxu0 %v527
  %1012 = vmatprep.subr.bf16.mxu0 %v525
  %1013 = vmatpush1.bf16.msra.mxu0 %v524
  %1014 = vmatprep.subr.bf16.mxu0 %v522
  %1015 = vmatpush1.bf16.msra.mxu0 %v521
  %1016 = vmatprep.subr.bf16.mxu0 %v519
  %1017 = vmatpush1.bf16.msra.mxu0 %v518
  %1018 = vmatprep.subr.bf16.mxu0 %v516
  %1019 = vmatpush1.bf16.msra.mxu0 %v515
  %1020 = vmatprep.subr.bf16.mxu0 0
  %1021 = vmatpush2.bf16.msra.mxu0 0
  %1022 = vmatprep.subr.bf16.mxu0 0
  %1023 = vmatpush2.bf16.msra.mxu0 0
  %1024 = vmatprep.subr.bf16.mxu0 0
  %1025 = vmatpush2.bf16.msra.mxu0 0
  %1026 = vmatprep.subr.bf16.mxu0 0
  %1027 = vmatpush2.bf16.msra.mxu0 0
  %1028 = vmatprep.subr.bf16.mxu0 0
  %1029 = vmatpush2.bf16.msra.mxu0 0
  %1030 = vmatprep.subr.bf16.mxu0 0
  %1031 = vmatpush2.bf16.msra.mxu0 0
  %1032 = vmatprep.subr.bf16.mxu0 0
  %1033 = vmatpush2.bf16.msra.mxu0 0
  %1034 = vmatprep.subr.bf16.mxu0 0
  %1035 = vmatpush2.bf16.msra.mxu0 0
  %1036 = vmatprep.mubr.bf16.mxu0 0
  %1037 = vmatmul.mubr.bf16.gmra.mxu0 %v1003
  %v1038 = vpop.f32.mrf.mxu0
  %v1039 = vadd.f32 0.0, %v1038
  %v1040 = vpop.f32.mrf.mxu0
  %v1041 = vadd.f32 0.0, %v1040
  %v1042 = vpop.f32.mrf.mxu0
  %v1043 = vpop.f32.mrf.mxu0
  %1044 = vdwg.mxu0
  %1045 = vmatprep.subr.bf16.mxu0 0
  %1046 = vmatpush1.bf16.msra.mxu0 %v538
  %1047 = vmatprep.subr.bf16.mxu0 0
  %1048 = vmatpush1.bf16.msra.mxu0 %v535
  %1049 = vmatprep.subr.bf16.mxu0 0
  %1050 = vmatpush1.bf16.msra.mxu0 %v532
  %1051 = vmatprep.subr.bf16.mxu0 0
  %1052 = vmatpush1.bf16.msra.mxu0 %v529
  %1053 = vmatprep.subr.bf16.mxu0 0
  %1054 = vmatpush1.bf16.msra.mxu0 %v526
  %1055 = vmatprep.subr.bf16.mxu0 0
  %1056 = vmatpush1.bf16.msra.mxu0 %v523
  %1057 = vmatprep.subr.bf16.mxu0 0
  %1058 = vmatpush1.bf16.msra.mxu0 %v520
  %1059 = vmatprep.subr.bf16.mxu0 0
  %1060 = vmatpush1.bf16.msra.mxu0 %v517
  %1061 = vmatprep.subr.bf16.mxu0 0
  %1062 = vmatpush2.bf16.msra.mxu0 0
  %1063 = vmatprep.subr.bf16.mxu0 0
  %1064 = vmatpush2.bf16.msra.mxu0 0
  %1065 = vmatprep.subr.bf16.mxu0 0
  %1066 = vmatpush2.bf16.msra.mxu0 0
  %1067 = vmatprep.subr.bf16.mxu0 0
  %1068 = vmatpush2.bf16.msra.mxu0 0
  %1069 = vmatprep.subr.bf16.mxu0 0
  %1070 = vmatpush2.bf16.msra.mxu0 0
  %1071 = vmatprep.subr.bf16.mxu0 0
  %1072 = vmatpush2.bf16.msra.mxu0 0
  %1073 = vmatprep.subr.bf16.mxu0 0
  %1074 = vmatpush2.bf16.msra.mxu0 0
  %1075 = vmatprep.subr.bf16.mxu0 0
  %1076 = vmatpush2.bf16.msra.mxu0 0
  %1077 = vmatprep.mubr.bf16.mxu0 0
  %1078 = vmatmul.mubr.bf16.gmra.mxu0 %v1003
  %v1079 = vpop.f32.mrf.mxu0
  %v1080 = vadd.f32 0.0, %v1079
  %v1081 = vpop.f32.mrf.mxu0
  %v1082 = vpop.f32.mrf.mxu0
  %v1083 = vpop.f32.mrf.mxu0
  %1084 = vdwg.mxu0
  %v1085 = vadd.f32 %v1000, %v1039
  %v1086 = vadd.f32 %v1001, %v1041
  %v1087 = vxor.u32 %v1085, 2147483648
  %v1088 = vxor.u32 %v1086, 2147483648
  %v1089 = vmul.f32 %v1087, 1.442695
  %v1090 = vpow.pop %v1089
  %v1091 = vmul.f32 %v1088, 1.442695
  %v1092 = vpow.pop %v1091
  %v1093 = vadd.f32 %v1090, 1.0
  %v1094 = vadd.f32 %v1092, 1.0
  %v1095 = vrcp.pop %v1093
  %v1096 = vmul.f32 1.0, %v1095
  %v1097 = vrcp.pop %v1094
  %v1098 = vmul.f32 1.0, %v1097
  %v1099 = vadd.f32 %v1080, %v662
  %v1100 = vmul.f32 %v1096, %v1099
  %v1101 = vadd.f32 %v1002, %v1100
  %v1102 = vtanh.pop %v1101
  %v1103 = vsub.f32 1.0, %v1098
  %v1104 = vmul.f32 %v1103, %v1102
  %v1105 = vmul.f32 %v1098, %v997
  %v1106 = vadd.f32 %v1104, %v1105
  %s1107 = scalar_lea.vmem %s5, 32
  %1108 = vst [vmem:[%s1107] sm:$0xff] %v1106
  %v1109 = vld [vmem:[#allocation2 + $0x78] sm:$0xff]
  %v1110 = vld [vmem:[#allocation2 + $0x80] sm:$0xff]
  %v1111 = vld [vmem:[#allocation2 + $0x88] sm:$0xff]
  %v1112 = vpack.c.bf16 %v1106, %v1106
  %1113 = vmatprep.subr.bf16.mxu0 %v537
  %1114 = vmatpush1.bf16.msra.mxu0 %v536
  %1115 = vmatprep.subr.bf16.mxu0 %v534
  %1116 = vmatpush1.bf16.msra.mxu0 %v533
  %1117 = vmatprep.subr.bf16.mxu0 %v531
  %1118 = vmatpush1.bf16.msra.mxu0 %v530
  %1119 = vmatprep.subr.bf16.mxu0 %v528
  %1120 = vmatpush1.bf16.msra.mxu0 %v527
  %1121 = vmatprep.subr.bf16.mxu0 %v525
  %1122 = vmatpush1.bf16.msra.mxu0 %v524
  %1123 = vmatprep.subr.bf16.mxu0 %v522
  %1124 = vmatpush1.bf16.msra.mxu0 %v521
  %1125 = vmatprep.subr.bf16.mxu0 %v519
  %1126 = vmatpush1.bf16.msra.mxu0 %v518
  %1127 = vmatprep.subr.bf16.mxu0 %v516
  %1128 = vmatpush1.bf16.msra.mxu0 %v515
  %1129 = vmatprep.subr.bf16.mxu0 0
  %1130 = vmatpush2.bf16.msra.mxu0 0
  %1131 = vmatprep.subr.bf16.mxu0 0
  %1132 = vmatpush2.bf16.msra.mxu0 0
  %1133 = vmatprep.subr.bf16.mxu0 0
  %1134 = vmatpush2.bf16.msra.mxu0 0
  %1135 = vmatprep.subr.bf16.mxu0 0
  %1136 = vmatpush2.bf16.msra.mxu0 0
  %1137 = vmatprep.subr.bf16.mxu0 0
  %1138 = vmatpush2.bf16.msra.mxu0 0
  %1139 = vmatprep.subr.bf16.mxu0 0
  %1140 = vmatpush2.bf16.msra.mxu0 0
  %1141 = vmatprep.subr.bf16.mxu0 0
  %1142 = vmatpush2.bf16.msra.mxu0 0
  %1143 = vmatprep.subr.bf16.mxu0 0
  %1144 = vmatpush2.bf16.msra.mxu0 0
  %1145 = vmatprep.mubr.bf16.mxu0 0
  %1146 = vmatmul.mubr.bf16.gmra.mxu0 %v1112
  %v1147 = vpop.f32.mrf.mxu0
  %v1148 = vadd.f32 0.0, %v1147
  %v1149 = vpop.f32.mrf.mxu0
  %v1150 = vadd.f32 0.0, %v1149
  %v1151 = vpop.f32.mrf.mxu0
  %v1152 = vpop.f32.mrf.mxu0
  %1153 = vdwg.mxu0
  %1154 = vmatprep.subr.bf16.mxu0 0
  %1155 = vmatpush1.bf16.msra.mxu0 %v538
  %1156 = vmatprep.subr.bf16.mxu0 0
  %1157 = vmatpush1.bf16.msra.mxu0 %v535
  %1158 = vmatprep.subr.bf16.mxu0 0
  %1159 = vmatpush1.bf16.msra.mxu0 %v532
  %1160 = vmatprep.subr.bf16.mxu0 0
  %1161 = vmatpush1.bf16.msra.mxu0 %v529
  %1162 = vmatprep.subr.bf16.mxu0 0
  %1163 = vmatpush1.bf16.msra.mxu0 %v526
  %1164 = vmatprep.subr.bf16.mxu0 0
  %1165 = vmatpush1.bf16.msra.mxu0 %v523
  %1166 = vmatprep.subr.bf16.mxu0 0
  %1167 = vmatpush1.bf16.msra.mxu0 %v520
  %1168 = vmatprep.subr.bf16.mxu0 0
  %1169 = vmatpush1.bf16.msra.mxu0 %v517
  %1170 = vmatprep.subr.bf16.mxu0 0
  %1171 = vmatpush2.bf16.msra.mxu0 0
  %1172 = vmatprep.subr.bf16.mxu0 0
  %1173 = vmatpush2.bf16.msra.mxu0 0
  %1174 = vmatprep.subr.bf16.mxu0 0
  %1175 = vmatpush2.bf16.msra.mxu0 0
  %1176 = vmatprep.subr.bf16.mxu0 0
  %1177 = vmatpush2.bf16.msra.mxu0 0
  %1178 = vmatprep.subr.bf16.mxu0 0
  %1179 = vmatpush2.bf16.msra.mxu0 0
  %1180 = vmatprep.subr.bf16.mxu0 0
  %1181 = vmatpush2.bf16.msra.mxu0 0
  %1182 = vmatprep.subr.bf16.mxu0 0
  %1183 = vmatpush2.bf16.msra.mxu0 0
  %1184 = vmatprep.subr.bf16.mxu0 0
  %1185 = vmatpush2.bf16.msra.mxu0 0
  %1186 = vmatprep.mubr.bf16.mxu0 0
  %1187 = vmatmul.mubr.bf16.gmra.mxu0 %v1112
  %v1188 = vpop.f32.mrf.mxu0
  %v1189 = vadd.f32 0.0, %v1188
  %v1190 = vpop.f32.mrf.mxu0
  %v1191 = vpop.f32.mrf.mxu0
  %v1192 = vpop.f32.mrf.mxu0
  %1193 = vdwg.mxu0
  %v1194 = vadd.f32 %v1109, %v1148
  %v1195 = vadd.f32 %v1110, %v1150
  %v1196 = vxor.u32 %v1194, 2147483648
  %v1197 = vxor.u32 %v1195, 2147483648
  %v1198 = vmul.f32 %v1196, 1.442695
  %v1199 = vpow.pop %v1198
  %v1200 = vmul.f32 %v1197, 1.442695
  %v1201 = vpow.pop %v1200
  %v1202 = vadd.f32 %v1199, 1.0
  %v1203 = vadd.f32 %v1201, 1.0
  %v1204 = vrcp.pop %v1202
  %v1205 = vmul.f32 1.0, %v1204
  %v1206 = vrcp.pop %v1203
  %v1207 = vmul.f32 1.0, %v1206
  %v1208 = vadd.f32 %v1189, %v662
  %v1209 = vmul.f32 %v1205, %v1208
  %v1210 = vadd.f32 %v1111, %v1209
  %v1211 = vtanh.pop %v1210
  %v1212 = vsub.f32 1.0, %v1207
  %v1213 = vmul.f32 %v1212, %v1211
  %v1214 = vmul.f32 %v1207, %v1106
  %v1215 = vadd.f32 %v1213, %v1214
  %s1216 = scalar_lea.vmem %s5, 40
  %1217 = vst [vmem:[%s1216] sm:$0xff] %v1215
  %v1218 = vld [vmem:[#allocation2 + $0x90] sm:$0xff]
  %v1219 = vld [vmem:[#allocation2 + $0x98] sm:$0xff]
  %v1220 = vld [vmem:[#allocation2 + $0xa0] sm:$0xff]
  %v1221 = vpack.c.bf16 %v1215, %v1215
  %1222 = vmatprep.subr.bf16.mxu0 %v537
  %1223 = vmatpush1.bf16.msra.mxu0 %v536
  %1224 = vmatprep.subr.bf16.mxu0 %v534
  %1225 = vmatpush1.bf16.msra.mxu0 %v533
  %1226 = vmatprep.subr.bf16.mxu0 %v531
  %1227 = vmatpush1.bf16.msra.mxu0 %v530
  %1228 = vmatprep.subr.bf16.mxu0 %v528
  %1229 = vmatpush1.bf16.msra.mxu0 %v527
  %1230 = vmatprep.subr.bf16.mxu0 %v525
  %1231 = vmatpush1.bf16.msra.mxu0 %v524
  %1232 = vmatprep.subr.bf16.mxu0 %v522
  %1233 = vmatpush1.bf16.msra.mxu0 %v521
  %1234 = vmatprep.subr.bf16.mxu0 %v519
  %1235 = vmatpush1.bf16.msra.mxu0 %v518
  %1236 = vmatprep.subr.bf16.mxu0 %v516
  %1237 = vmatpush1.bf16.msra.mxu0 %v515
  %1238 = vmatprep.subr.bf16.mxu0 0
  %1239 = vmatpush2.bf16.msra.mxu0 0
  %1240 = vmatprep.subr.bf16.mxu0 0
  %1241 = vmatpush2.bf16.msra.mxu0 0
  %1242 = vmatprep.subr.bf16.mxu0 0
  %1243 = vmatpush2.bf16.msra.mxu0 0
  %1244 = vmatprep.subr.bf16.mxu0 0
  %1245 = vmatpush2.bf16.msra.mxu0 0
  %1246 = vmatprep.subr.bf16.mxu0 0
  %1247 = vmatpush2.bf16.msra.mxu0 0
  %1248 = vmatprep.subr.bf16.mxu0 0
  %1249 = vmatpush2.bf16.msra.mxu0 0
  %1250 = vmatprep.subr.bf16.mxu0 0
  %1251 = vmatpush2.bf16.msra.mxu0 0
  %1252 = vmatprep.subr.bf16.mxu0 0
  %1253 = vmatpush2.bf16.msra.mxu0 0
  %1254 = vmatprep.mubr.bf16.mxu0 0
  %1255 = vmatmul.mubr.bf16.gmra.mxu0 %v1221
  %v1256 = vpop.f32.mrf.mxu0
  %v1257 = vadd.f32 0.0, %v1256
  %v1258 = vpop.f32.mrf.mxu0
  %v1259 = vadd.f32 0.0, %v1258
  %v1260 = vpop.f32.mrf.mxu0
  %v1261 = vpop.f32.mrf.mxu0
  %1262 = vdwg.mxu0
  %1263 = vmatprep.subr.bf16.mxu0 0
  %1264 = vmatpush1.bf16.msra.mxu0 %v538
  %1265 = vmatprep.subr.bf16.mxu0 0
  %1266 = vmatpush1.bf16.msra.mxu0 %v535
  %1267 = vmatprep.subr.bf16.mxu0 0
  %1268 = vmatpush1.bf16.msra.mxu0 %v532
  %1269 = vmatprep.subr.bf16.mxu0 0
  %1270 = vmatpush1.bf16.msra.mxu0 %v529
  %1271 = vmatprep.subr.bf16.mxu0 0
  %1272 = vmatpush1.bf16.msra.mxu0 %v526
  %1273 = vmatprep.subr.bf16.mxu0 0
  %1274 = vmatpush1.bf16.msra.mxu0 %v523
  %1275 = vmatprep.subr.bf16.mxu0 0
  %1276 = vmatpush1.bf16.msra.mxu0 %v520
  %1277 = vmatprep.subr.bf16.mxu0 0
  %1278 = vmatpush1.bf16.msra.mxu0 %v517
  %1279 = vmatprep.subr.bf16.mxu0 0
  %1280 = vmatpush2.bf16.msra.mxu0 0
  %1281 = vmatprep.subr.bf16.mxu0 0
  %1282 = vmatpush2.bf16.msra.mxu0 0
  %1283 = vmatprep.subr.bf16.mxu0 0
  %1284 = vmatpush2.bf16.msra.mxu0 0
  %1285 = vmatprep.subr.bf16.mxu0 0
  %1286 = vmatpush2.bf16.msra.mxu0 0
  %1287 = vmatprep.subr.bf16.mxu0 0
  %1288 = vmatpush2.bf16.msra.mxu0 0
  %1289 = vmatprep.subr.bf16.mxu0 0
  %1290 = vmatpush2.bf16.msra.mxu0 0
  %1291 = vmatprep.subr.bf16.mxu0 0
  %1292 = vmatpush2.bf16.msra.mxu0 0
  %1293 = vmatprep.subr.bf16.mxu0 0
  %1294 = vmatpush2.bf16.msra.mxu0 0
  %1295 = vmatprep.mubr.bf16.mxu0 0
  %1296 = vmatmul.mubr.bf16.gmra.mxu0 %v1221
  %v1297 = vpop.f32.mrf.mxu0
  %v1298 = vadd.f32 0.0, %v1297
  %v1299 = vpop.f32.mrf.mxu0
  %v1300 = vpop.f32.mrf.mxu0
  %v1301 = vpop.f32.mrf.mxu0
  %1302 = vdwg.mxu0
  %v1303 = vadd.f32 %v1218, %v1257
  %v1304 = vadd.f32 %v1219, %v1259
  %v1305 = vxor.u32 %v1303, 2147483648
  %v1306 = vxor.u32 %v1304, 2147483648
  %v1307 = vmul.f32 %v1305, 1.442695
  %v1308 = vpow.pop %v1307
  %v1309 = vmul.f32 %v1306, 1.442695
  %v1310 = vpow.pop %v1309
  %v1311 = vadd.f32 %v1308, 1.0
  %v1312 = vadd.f32 %v1310, 1.0
  %v1313 = vrcp.pop %v1311
  %v1314 = vmul.f32 1.0, %v1313
  %v1315 = vrcp.pop %v1312
  %v1316 = vmul.f32 1.0, %v1315
  %v1317 = vadd.f32 %v1298, %v662
  %v1318 = vmul.f32 %v1314, %v1317
  %v1319 = vadd.f32 %v1220, %v1318
  %v1320 = vtanh.pop %v1319
  %v1321 = vsub.f32 1.0, %v1316
  %v1322 = vmul.f32 %v1321, %v1320
  %v1323 = vmul.f32 %v1316, %v1215
  %v1324 = vadd.f32 %v1322, %v1323
  %s1325 = scalar_lea.vmem %s5, 48
  %1326 = vst [vmem:[%s1325] sm:$0xff] %v1324
  %v1327 = vld [vmem:[#allocation2 + $0xa8] sm:$0xff]
  %v1328 = vld [vmem:[#allocation2 + $0xb0] sm:$0xff]
  %v1329 = vld [vmem:[#allocation2 + $0xb8] sm:$0xff]
  %v1330 = vpack.c.bf16 %v1324, %v1324
  %1331 = vmatprep.subr.bf16.mxu0 %v537
  %1332 = vmatpush1.bf16.msra.mxu0 %v536
  %1333 = vmatprep.subr.bf16.mxu0 %v534
  %1334 = vmatpush1.bf16.msra.mxu0 %v533
  %1335 = vmatprep.subr.bf16.mxu0 %v531
  %1336 = vmatpush1.bf16.msra.mxu0 %v530
  %1337 = vmatprep.subr.bf16.mxu0 %v528
  %1338 = vmatpush1.bf16.msra.mxu0 %v527
  %1339 = vmatprep.subr.bf16.mxu0 %v525
  %1340 = vmatpush1.bf16.msra.mxu0 %v524
  %1341 = vmatprep.subr.bf16.mxu0 %v522
  %1342 = vmatpush1.bf16.msra.mxu0 %v521
  %1343 = vmatprep.subr.bf16.mxu0 %v519
  %1344 = vmatpush1.bf16.msra.mxu0 %v518
  %1345 = vmatprep.subr.bf16.mxu0 %v516
  %1346 = vmatpush1.bf16.msra.mxu0 %v515
  %1347 = vmatprep.subr.bf16.mxu0 0
  %1348 = vmatpush2.bf16.msra.mxu0 0
  %1349 = vmatprep.subr.bf16.mxu0 0
  %1350 = vmatpush2.bf16.msra.mxu0 0
  %1351 = vmatprep.subr.bf16.mxu0 0
  %1352 = vmatpush2.bf16.msra.mxu0 0
  %1353 = vmatprep.subr.bf16.mxu0 0
  %1354 = vmatpush2.bf16.msra.mxu0 0
  %1355 = vmatprep.subr.bf16.mxu0 0
  %1356 = vmatpush2.bf16.msra.mxu0 0
  %1357 = vmatprep.subr.bf16.mxu0 0
  %1358 = vmatpush2.bf16.msra.mxu0 0
  %1359 = vmatprep.subr.bf16.mxu0 0
  %1360 = vmatpush2.bf16.msra.mxu0 0
  %1361 = vmatprep.subr.bf16.mxu0 0
  %1362 = vmatpush2.bf16.msra.mxu0 0
  %1363 = vmatprep.mubr.bf16.mxu0 0
  %1364 = vmatmul.mubr.bf16.gmra.mxu0 %v1330
  %v1365 = vpop.f32.mrf.mxu0
  %v1366 = vadd.f32 0.0, %v1365
  %v1367 = vpop.f32.mrf.mxu0
  %v1368 = vadd.f32 0.0, %v1367
  %v1369 = vpop.f32.mrf.mxu0
  %v1370 = vpop.f32.mrf.mxu0
  %1371 = vdwg.mxu0
  %1372 = vmatprep.subr.bf16.mxu0 0
  %1373 = vmatpush1.bf16.msra.mxu0 %v538
  %1374 = vmatprep.subr.bf16.mxu0 0
  %1375 = vmatpush1.bf16.msra.mxu0 %v535
  %1376 = vmatprep.subr.bf16.mxu0 0
  %1377 = vmatpush1.bf16.msra.mxu0 %v532
  %1378 = vmatprep.subr.bf16.mxu0 0
  %1379 = vmatpush1.bf16.msra.mxu0 %v529
  %1380 = vmatprep.subr.bf16.mxu0 0
  %1381 = vmatpush1.bf16.msra.mxu0 %v526
  %1382 = vmatprep.subr.bf16.mxu0 0
  %1383 = vmatpush1.bf16.msra.mxu0 %v523
  %1384 = vmatprep.subr.bf16.mxu0 0
  %1385 = vmatpush1.bf16.msra.mxu0 %v520
  %1386 = vmatprep.subr.bf16.mxu0 0
  %1387 = vmatpush1.bf16.msra.mxu0 %v517
  %1388 = vmatprep.subr.bf16.mxu0 0
  %1389 = vmatpush2.bf16.msra.mxu0 0
  %1390 = vmatprep.subr.bf16.mxu0 0
  %1391 = vmatpush2.bf16.msra.mxu0 0
  %1392 = vmatprep.subr.bf16.mxu0 0
  %1393 = vmatpush2.bf16.msra.mxu0 0
  %1394 = vmatprep.subr.bf16.mxu0 0
  %1395 = vmatpush2.bf16.msra.mxu0 0
  %1396 = vmatprep.subr.bf16.mxu0 0
  %1397 = vmatpush2.bf16.msra.mxu0 0
  %1398 = vmatprep.subr.bf16.mxu0 0
  %1399 = vmatpush2.bf16.msra.mxu0 0
  %1400 = vmatprep.subr.bf16.mxu0 0
  %1401 = vmatpush2.bf16.msra.mxu0 0
  %1402 = vmatprep.subr.bf16.mxu0 0
  %1403 = vmatpush2.bf16.msra.mxu0 0
  %1404 = vmatprep.mubr.bf16.mxu0 0
  %1405 = vmatmul.mubr.bf16.gmra.mxu0 %v1330
  %v1406 = vpop.f32.mrf.mxu0
  %v1407 = vadd.f32 0.0, %v1406
  %v1408 = vpop.f32.mrf.mxu0
  %v1409 = vpop.f32.mrf.mxu0
  %v1410 = vpop.f32.mrf.mxu0
  %1411 = vdwg.mxu0
  %v1412 = vadd.f32 %v1327, %v1366
  %v1413 = vadd.f32 %v1328, %v1368
  %v1414 = vxor.u32 %v1412, 2147483648
  %v1415 = vxor.u32 %v1413, 2147483648
  %v1416 = vmul.f32 %v1414, 1.442695
  %v1417 = vpow.pop %v1416
  %v1418 = vmul.f32 %v1415, 1.442695
  %v1419 = vpow.pop %v1418
  %v1420 = vadd.f32 %v1417, 1.0
  %v1421 = vadd.f32 %v1419, 1.0
  %v1422 = vrcp.pop %v1420
  %v1423 = vmul.f32 1.0, %v1422
  %v1424 = vrcp.pop %v1421
  %v1425 = vmul.f32 1.0, %v1424
  %v1426 = vadd.f32 %v1407, %v662
  %v1427 = vmul.f32 %v1423, %v1426
  %v1428 = vadd.f32 %v1329, %v1427
  %v1429 = vtanh.pop %v1428
  %v1430 = vsub.f32 1.0, %v1425
  %v1431 = vmul.f32 %v1430, %v1429
  %v1432 = vmul.f32 %v1425, %v1324
  %v1433 = vadd.f32 %v1431, %v1432
  %s1434 = scalar_lea.vmem %s5, 56
  %1435 = vst [vmem:[%s1434] sm:$0xff] %v1433
  %1436 = vst [vmem:[#allocation3] sm:$0xff] %v1433
  // Predicated region
  $region26: #{recurrent_positional_encoding.1} parent=0 // pred_check
    _
  $region27: #{recurrent_positional_encoding.1} parent=0 // pred_check_branch
    %1438 = sbr.rel (0) target = $region29
  $region28: #{recurrent_positional_encoding.1} parent=0 // pred_region
    _
  $region29: #{recurrent_positional_encoding.1} parent=0 // pred_fallthru
    _
  // Predicated region
  $region30: #{recurrent_positional_encoding.1} parent=0 // pred_check
    _
  $region31: #{recurrent_positional_encoding.1} parent=0 // pred_check_branch
    %1440 = sbr.rel (0) target = $region33
  $region32: #{recurrent_positional_encoding.1} parent=0 // pred_region
    _
  $region33: #{recurrent_positional_encoding.1} parent=0 // pred_fallthru
    _

</llo_original>
